<compile_context>
chip_gen: v5e
topology: v5e:2x2
jax: 0.10.0
libtpu: 0.0.40
codegen_flags: <defaults>
</compile_context>

<pallas_src>
import functools

import jax
import jax.numpy as jnp
from jax.experimental import pallas as pl
from jax.experimental.pallas import tpu as pltpu


def _silu(x):
    return x * jax.nn.sigmoid(x)


def _round_up(x, m):
    return (x + m - 1) // m * m


def _pick_tile_h(H, per_row_bytes, fixed_bytes, budget_bytes=26 * 1024 * 1024):
    """Largest multiple-of-4 divisor of H that fits the VMEM budget, preferring at
    least two row tiles so both v7x TensorCores get work even at batch 1."""
    cands = [t for t in (64, 32, 16, 8, 4) if H % t == 0]

    def fits(t):
        return fixed_bytes + t * per_row_bytes <= budget_bytes

    for t in cands:
        if t <= H // 2 and fits(t):
            return t
    for t in cands:
        if fits(t):
            return t
    return cands[-1] if cands else H


# ----------------------------------------------------------------------------
# cv1: 3x3 conv (pad=1, stride=1) + folded BN + SiLU.  In-kernel halo handling
# (no HBM pad copy).
# ----------------------------------------------------------------------------
def _conv3x3_kernel(xm_ref, xt_ref, xb_ref, w_ref, s_ref, b_ref, o_ref, *,
                    TH, W, Wp, n_tiles):
    i = pl.program_id(1)
    Cin = xm_ref.shape[-1]
    Cout = o_ref.shape[-1]
    dt = xm_ref.dtype

    # Row halos; zeroed at the image top/bottom (conv zero padding).
    top = xt_ref[0] * (i > 0).astype(dt)
    bot = xb_ref[0] * (i < n_tiles - 1).astype(dt)
    xwin = jnp.concatenate([top, xm_ref[0], bot], axis=0)            # (TH+2, W, Cin)

    # Column zero padding (1 left, Wp-W-1 right) assembled in VMEM.
    zl = jnp.zeros((TH + 2, 1, Cin), dt)
    zr = jnp.zeros((TH + 2, Wp - W - 1, Cin), dt)
    xwin = jnp.concatenate([zl, xwin, zr], axis=1)                   # (TH+2, Wp, Cin)

    xflat = xwin.reshape((TH + 2) * Wp, Cin)
    n = (TH + 2) * Wp
    nout = TH * Wp

    acc = None
    for dw in range(3):
        # Column shift: one XLU roll of the whole flattened window per dw.
        xs = xflat if dw == 0 else pltpu.roll(xflat, shift=n - dw, axis=0)
        # Sum the 3 dh taps before touching the accumulator (fewer RMW passes).
        t = jnp.dot(xs[0:nout], w_ref[dw], preferred_element_type=jnp.float32)
        t = t + jnp.dot(xs[Wp:Wp + nout], w_ref[3 + dw],
                        preferred_element_type=jnp.float32)
        t = t + jnp.dot(xs[2 * Wp:2 * Wp + nout], w_ref[6 + dw],
                        preferred_element_type=jnp.float32)
        acc = t if acc is None else acc + t

    y = _silu(acc * s_ref[...] + b_ref[...])
    o_ref[0] = y.reshape(TH, Wp, Cout)[:, :W, :].astype(o_ref.dtype)


def conv3x3_bn_silu(x_nhwc, w_oihw, scale, bias, *, compute_dtype=None):
    N, H, W, Cin = x_nhwc.shape
    Cout = w_oihw.shape[0]
    Wp = _round_up(W + 2, 8)
    assert Wp >= W + 2  # roll-wraparound values must land in discarded columns

    mm_dtype = compute_dtype if compute_dtype is not None else x_nhwc.dtype
    x = x_nhwc.astype(mm_dtype)
    w = jnp.transpose(w_oihw, (2, 3, 1, 0)).reshape(9, Cin, Cout).astype(mm_dtype)
    s = scale.reshape(1, Cout).astype(jnp.float32)
    b = bias.reshape(1, Cout).astype(jnp.float32)

    isz = jnp.dtype(mm_dtype).itemsize
    per_row = (W * Cin * isz * 2            # main input rows (double buffered)
               + 3 * Wp * Cin * isz         # window assembly + rolled copy
               + 2 * Wp * Cout * 4          # f32 accumulator + live dot term
               + W * Cout * isz * 2)        # output rows (double buffered)
    fixed = (9 * Cin * Cout * isz * 2       # double-buffered weight block
             + 2 * W * Cin * isz * 4        # halo row blocks (double buffered)
             + 2 * Wp * Cin * isz           # window halo rows
             + 4 * Cout * 4)
    TH = _pick_tile_h(H, per_row, fixed)
    n_tiles = H // TH

    kernel = functools.partial(_conv3x3_kernel, TH=TH, W=W, Wp=Wp, n_tiles=n_tiles)
    return pl.pallas_call(
        kernel,
        out_shape=jax.ShapeDtypeStruct((N, H, W, Cout), mm_dtype),
        grid=(N, n_tiles),
        in_specs=[
            pl.BlockSpec((1, TH, W, Cin), lambda n, i: (n, i, 0, 0)),
            pl.BlockSpec((1, 1, W, Cin),
                         lambda n, i: (n, jnp.maximum(i * TH - 1, 0), 0, 0)),
            pl.BlockSpec((1, 1, W, Cin),
                         lambda n, i: (n, jnp.minimum((i + 1) * TH, H - 1), 0, 0)),
            pl.BlockSpec((9, Cin, Cout), lambda n, i: (0, 0, 0)),
            pl.BlockSpec((1, Cout), lambda n, i: (0, 0)),
            pl.BlockSpec((1, Cout), lambda n, i: (0, 0)),
        ],
        out_specs=pl.BlockSpec((1, TH, W, Cout), lambda n, i: (n, i, 0, 0)),
        compiler_params=pltpu.CompilerParams(
            dimension_semantics=("parallel", "parallel"),
            vmem_limit_bytes=48 * 1024 * 1024),
    )(x, x, x, w, s, b)


# ----------------------------------------------------------------------------
# Fused kernel: ConvTranspose2d(k=2,s=2,bias) upsample  ->  cv2 (3x3+BN+SiLU)
#               ->  cv3 (1x1+BN+SiLU), all in one pallas_call.
# The upsampled activation never leaves VMEM.
# ----------------------------------------------------------------------------
def _up_cv2_cv3_kernel(xm_ref, xt_ref, xb_ref, wt_ref, bt_ref,
                       w2_ref, s2_ref, b2_ref, w3_ref, s3_ref, b3_ref,
                       o_ref, *, TH, W, Wp2, n_tiles):
    i = pl.program_id(1)
    C = xm_ref.shape[-1]
    c2 = w3_ref.shape[-1]
    f32 = jnp.float32
    mm_dt = w2_ref.dtype

    bt = bt_ref[...].astype(f32)                                    # (1, C)

    def up(x, di, dj):
        # One ConvTranspose2d phase: (rows, C) @ Wt[di, dj] + bias, f32 accumulate.
        return jnp.dot(x, wt_ref[di * 2 + dj],
                       preferred_element_type=jnp.float32) + bt

    def interleave_cols(z0, z1, rows):
        # z0/z1: (rows*W, C) even/odd column phases -> (rows, 2W, C)
        return jnp.concatenate([z0, z1], axis=1).reshape(rows, 2 * W, C)

    # --- build the haloed 2x-upsampled window in VMEM ---
    xm = xm_ref[0].reshape(TH * W, C)
    u0 = interleave_cols(up(xm, 0, 0), up(xm, 0, 1), TH)            # even hi-res rows
    u1 = interleave_cols(up(xm, 1, 0), up(xm, 1, 1), TH)            # odd  hi-res rows
    u_main = jnp.concatenate([u0, u1], axis=1).reshape(2 * TH, 2 * W, C)

    # hi-res halo rows; zeroed at the image top/bottom (cv2's conv zero padding).
    top_mask = (i > 0).astype(f32)
    bot_mask = (i < n_tiles - 1).astype(f32)
    xt = xt_ref[0, 0]                                               # (W, C)
    xb = xb_ref[0, 0]
    u_top = interleave_cols(up(xt, 1, 0), up(xt, 1, 1), 1) * top_mask
    u_bot = interleave_cols(up(xb, 0, 0), up(xb, 0, 1), 1) * bot_mask

    win = jnp.concatenate([u_top, u_main, u_bot], axis=0)           # (2TH+2, 2W, C)
    # Column zero padding (1 left, Wp2-2W-1 right) assembled in VMEM.
    zl = jnp.zeros((2 * TH + 2, 1, C), f32)
    zr = jnp.zeros((2 * TH + 2, Wp2 - 2 * W - 1, C), f32)
    win = jnp.concatenate([zl, win, zr], axis=1)                    # (2TH+2, Wp2, C)

    nwin = (2 * TH + 2) * Wp2
    nout = 2 * TH * Wp2
    winf = win.reshape(nwin, C).astype(mm_dt)

    # --- cv2: 3x3 conv via flattened rolls; 3 dh taps summed per accumulator pass ---
    acc = None
    for dw in range(3):
        xs = winf if dw == 0 else pltpu.roll(winf, shift=nwin - dw, axis=0)
        t = jnp.dot(xs[0:nout], w2_ref[dw], preferred_element_type=jnp.float32)
        t = t + jnp.dot(xs[Wp2:Wp2 + nout], w2_ref[3 + dw],
                        preferred_element_type=jnp.float32)
        t = t + jnp.dot(xs[2 * Wp2:2 * Wp2 + nout], w2_ref[6 + dw],
                        preferred_element_type=jnp.float32)
        acc = t if acc is None else acc + t

    y = _silu(acc * s2_ref[...] + b2_ref[...])                      # (2TH*Wp2, C) f32

    # --- cv3: 1x1 conv + BN + SiLU, fused epilogue ---
    y = jnp.dot(y.astype(mm_dt), w3_ref[...], preferred_element_type=jnp.float32)
    y = _silu(y * s3_ref[...] + b3_ref[...])                        # (2TH*Wp2, c2)

    y = y.reshape(2 * TH, Wp2, c2)[:, :2 * W, :]                    # drop pad columns
    o_ref[0] = y.reshape(2 * TH, 2 * W * c2).astype(o_ref.dtype)    # lane-dense store


def upsample_cv2_cv3(y1, wt_iokk, bt, w2_oihw, s2, b2, w3_oihw, s3, b3, *,
                     compute_dtype=None, out_dtype=None):
    N, H, W, C = y1.shape
    c2 = w3_oihw.shape[0]
    Wp2 = _round_up(2 * W + 2, 8)
    assert Wp2 >= 2 * W + 2  # roll-wraparound values must land in discarded columns
    out_dtype = y1.dtype if out_dtype is None else out_dtype
    mm_dtype = compute_dtype if compute_dtype is not None else y1.dtype

    wt = jnp.transpose(wt_iokk, (2, 3, 0, 1)).reshape(4, C, C).astype(mm_dtype)
    w2 = jnp.transpose(w2_oihw, (2, 3, 1, 0)).reshape(9, C, C).astype(mm_dtype)
    w3 = jnp.transpose(w3_oihw[:, :, 0, 0], (1, 0)).astype(mm_dtype)   # (C, c2)
    bt = bt.reshape(1, C).astype(jnp.float32)
    s2 = s2.reshape(1, C).astype(jnp.float32)
    b2 = b2.reshape(1, C).astype(jnp.float32)
    s3 = s3.reshape(1, c2).astype(jnp.float32)
    b3 = b3.reshape(1, c2).astype(jnp.float32)
    y1 = y1.astype(mm_dtype)

    in_isz = jnp.dtype(mm_dtype).itemsize
    out_isz = jnp.dtype(out_dtype).itemsize
    per_row = (W * C * in_isz * 2                     # main y1 rows (double buffered)
               + 2 * Wp2 * C * (4 + in_isz)           # f32 window + compute-dtype copy
               + 4 * 2 * W * C * 4                    # interleave intermediates
               + 2 * 2 * Wp2 * C * 4                  # f32 accumulator + live term
               + 2 * Wp2 * c2 * 4                     # cv3 result
               + 2 * 2 * W * c2 * out_isz * 2)        # output rows (double buffered)
    fixed = ((13 * C * C + C * c2) * in_isz * 2       # double-buffered weight blocks
             + 2 * W * C * in_isz * 4                 # halo row blocks
             + 2 * Wp2 * C * 4                        # window halo rows
             + (4 * C + 2 * c2) * 4)
    TH = _pick_tile_h(H, per_row, fixed)
    n_tiles = H // TH

    kernel = functools.partial(_up_cv2_cv3_kernel, TH=TH, W=W, Wp2=Wp2,
                               n_tiles=n_tiles)
    out_flat = pl.pallas_call(
        kernel,
        out_shape=jax.ShapeDtypeStruct((N, 2 * H, 2 * W * c2), out_dtype),
        grid=(N, n_tiles),
        in_specs=[
            pl.BlockSpec((1, TH, W, C), lambda n, i: (n, i, 0, 0)),
            pl.BlockSpec((1, 1, W, C),
                         lambda n, i: (n, jnp.maximum(i * TH - 1, 0), 0, 0)),
            pl.BlockSpec((1, 1, W, C),
                         lambda n, i: (n, jnp.minimum((i + 1) * TH, H - 1), 0, 0)),
            pl.BlockSpec((4, C, C), lambda n, i: (0, 0, 0)),
            pl.BlockSpec((1, C), lambda n, i: (0, 0)),
            pl.BlockSpec((9, C, C), lambda n, i: (0, 0, 0)),
            pl.BlockSpec((1, C), lambda n, i: (0, 0)),
            pl.BlockSpec((1, C), lambda n, i: (0, 0)),
            pl.BlockSpec((C, c2), lambda n, i: (0, 0)),
            pl.BlockSpec((1, c2), lambda n, i: (0, 0)),
            pl.BlockSpec((1, c2), lambda n, i: (0, 0)),
        ],
        out_specs=pl.BlockSpec((1, 2 * TH, 2 * W * c2), lambda n, i: (n, i, 0)),
        compiler_params=pltpu.CompilerParams(
            dimension_semantics=("parallel", "parallel"),
            vmem_limit_bytes=48 * 1024 * 1024),
    )(y1, y1, y1, wt, bt, w2, s2, b2, w3, s3, b3)
    # (N, 2H, 2W*c2) is byte-identical to (N, 2H, 2W, c2): free reshape.
    return out_flat.reshape(N, 2 * H, 2 * W, c2)


# ----------------------------------------------------------------------------
# Proto forward (NCHW in / NCHW out, like PyTorch)
# ----------------------------------------------------------------------------
def proto_forward(x_nchw, params, *, compute_dtype=jnp.bfloat16):
    out_dtype = x_nchw.dtype
    x = jnp.transpose(x_nchw, (0, 2, 3, 1))                 # NCHW -> NHWC
    w1, s1, b1 = params["cv1"]
    y1 = conv3x3_bn_silu(x, w1, s1, b1, compute_dtype=compute_dtype)
    wt, bt = params["upsample"]
    w2, s2, b2 = params["cv2"]
    w3, s3, b3 = params["cv3"]
    out = upsample_cv2_cv3(y1, wt, bt, w2, s2, b2, w3, s3, b3,
                           compute_dtype=compute_dtype, out_dtype=out_dtype)
    return jnp.transpose(out, (0, 3, 1, 2))                 # NHWC -> NCHW


# ----------------------------------------------------------------------------
# Pure-JAX reference (correctness check only)
# ----------------------------------------------------------------------------
def _ref_conv_bn_silu(x_nhwc, w_oihw, scale, bias, k):
    w_hwio = jnp.transpose(w_oihw, (2, 3, 1, 0))
    p = k // 2
    y = jax.lax.conv_general_dilated(
        x_nhwc, w_hwio, (1, 1), ((p, p), (p, p)),
        dimension_numbers=("NHWC", "HWIO", "NHWC"))
    return _silu(y * scale + bias)


def _ref_upsample(x_nhwc, wt_iokk, bias):
    N, H, W, _ = x_nhwc.shape
    u = jnp.einsum("nhwc,cokl->nhkwlo", x_nhwc, wt_iokk)
    return u.reshape(N, 2 * H, 2 * W, wt_iokk.shape[1]) + bias


def proto_reference(x_nchw, params):
    x = jnp.transpose(x_nchw, (0, 2, 3, 1))
    w1, s1, b1 = params["cv1"]
    y = _ref_conv_bn_silu(x, w1, s1, b1, 3)
    wt, bt = params["upsample"]
    y = _ref_upsample(y, wt, bt)
    w2, s2, b2 = params["cv2"]
    y = _ref_conv_bn_silu(y, w2, s2, b2, 3)
    w3, s3, b3 = params["cv3"]
    y = _ref_conv_bn_silu(y, w3, s3, b3, 1)
    return jnp.transpose(y, (0, 3, 1, 2))


def make_conv_bn(key, cin, cout, k, eps=1e-3):
    kw, kg, kb, km, kv = jax.random.split(key, 5)
    w = jax.random.normal(kw, (cout, cin, k, k), jnp.float32) / jnp.sqrt(cin * k * k)
    gamma = jax.random.uniform(kg, (cout,), jnp.float32, 0.5, 1.5)
    beta = jax.random.normal(kb, (cout,), jnp.float32) * 0.1
    mean = jax.random.normal(km, (cout,), jnp.float32) * 0.1
    var = jax.random.uniform(kv, (cout,), jnp.float32, 0.5, 1.5)
    scale = gamma / jnp.sqrt(var + eps)   # folded BN
    bias = beta - mean * scale
    return w, scale, bias


def make_convtranspose2x2(key, c):
    kw, kb = jax.random.split(key)
    wt = jax.random.normal(kw, (c, c, 2, 2), jnp.float32) / jnp.sqrt(c * 4.0)
    b = jax.random.normal(kb, (c,), jnp.float32) * 0.1
    return wt, b


if __name__ == "__main__":
    key = jax.random.PRNGKey(0)
    N, c1, c_, c2 = 2, 8, 32, 16
    H = W = 16

    k_x, k1, k2, k3, k4 = jax.random.split(key, 5)
    x = jax.random.normal(k_x, (N, c1, H, W), jnp.float32)   # NCHW, like PyTorch

    params = {
        "cv1": make_conv_bn(k1, c1, c_, 3),
        "upsample": make_convtranspose2x2(k2, c_),
        "cv2": make_conv_bn(k3, c_, c_, 3),
        "cv3": make_conv_bn(k4, c_, c2, 1),
    }

    ref = jax.block_until_ready(proto_reference(x, params))

    # f32 MXU operands: tight tolerance.
    out_f32 = jax.block_until_ready(proto_forward(x, params, compute_dtype=None))
    assert out_f32.shape == (N, c2, 2 * H, 2 * W), out_f32.shape
    err_f32 = float(jnp.max(jnp.abs(out_f32 - ref)))
    assert err_f32 < 1e-3, f"f32 path max err {err_f32}"

    # Default path (bf16 MXU operands, f32 accumulation): loose tolerance.
    out_bf16 = jax.block_until_ready(proto_forward(x, params))
    assert out_bf16.shape == (N, c2, 2 * H, 2 * W), out_bf16.shape
    err_bf16 = float(jnp.max(jnp.abs(out_bf16 - ref)))
    assert err_bf16 < 0.25, f"bf16 path max err {err_bf16}"

    print("KERNEL_OK")
</pallas_src>

<mosaic_0001>
module attributes {stable_mosaic.version = 11 : i64} {
  func.func @_conv3x3_kernel(%arg0: i32, %arg1: i32, %arg2: memref<1x8x16x8xf32, #tpu.memory_space<vmem>>, %arg3: memref<1x1x16x8xf32, #tpu.memory_space<vmem>>, %arg4: memref<1x1x16x8xf32, #tpu.memory_space<vmem>>, %arg5: memref<9x8x32xf32, #tpu.memory_space<vmem>>, %arg6: memref<1x32xf32, #tpu.memory_space<vmem>>, %arg7: memref<1x32xf32, #tpu.memory_space<vmem>>, %arg8: memref<1x8x16x32xf32, #tpu.memory_space<vmem>>) attributes {dimension_semantics = [#tpu.dimension_semantics<parallel>, #tpu.dimension_semantics<parallel>], iteration_bounds = array<i64: 2, 2>, scalar_prefetch = 0 : i64, scratch_operands = 0 : i64, tpu.core_type = #tpu.core_type<tc>, window_params = [{transform_indices = @transform_0, window_bounds = array<i64: 1, 8, 16, 8>}, {transform_indices = @transform_1, window_bounds = array<i64: 1, 1, 16, 8>}, {transform_indices = @transform_2, window_bounds = array<i64: 1, 1, 16, 8>}, {pipeline_mode = #tpu.pipeline_mode<synchronous>, transform_indices = @transform_3, window_bounds = array<i64: 9, 8, 32>}, {pipeline_mode = #tpu.pipeline_mode<synchronous>, transform_indices = @transform_4, window_bounds = array<i64: 1, 32>}, {pipeline_mode = #tpu.pipeline_mode<synchronous>, transform_indices = @transform_5, window_bounds = array<i64: 1, 32>}, {transform_indices = @transform_6, window_bounds = array<i64: 1, 8, 16, 32>}]} {
    %c0 = arith.constant 0 : index
    %c0_0 = arith.constant 0 : index
    %c0_1 = arith.constant 0 : index
    %c0_2 = arith.constant 0 : index
    %0 = vector.load %arg3[%c0, %c0_0, %c0_1, %c0_2] : memref<1x1x16x8xf32, #tpu.memory_space<vmem>>, vector<1x1x16x8xf32>
    %1 = vector.shape_cast %0 : vector<1x1x16x8xf32> to vector<1x16x8xf32>
    %c0_i32 = arith.constant 0 : i32
    %2 = arith.cmpi sgt, %arg1, %c0_i32 : i32
    %3 = arith.extui %2 : i1 to i32
    %4 = arith.sitofp %3 : i32 to f32
    %5 = vector.broadcast %4 : f32 to vector<1x16x8xf32>
    %6 = arith.mulf %1, %5 : vector<1x16x8xf32>
    %c0_3 = arith.constant 0 : index
    %c0_4 = arith.constant 0 : index
    %c0_5 = arith.constant 0 : index
    %c0_6 = arith.constant 0 : index
    %7 = vector.load %arg4[%c0_3, %c0_4, %c0_5, %c0_6] : memref<1x1x16x8xf32, #tpu.memory_space<vmem>>, vector<1x1x16x8xf32>
    %8 = vector.shape_cast %7 : vector<1x1x16x8xf32> to vector<1x16x8xf32>
    %c1_i32 = arith.constant 1 : i32
    %9 = arith.cmpi slt, %arg1, %c1_i32 : i32
    %10 = arith.extui %9 : i1 to i32
    %11 = arith.sitofp %10 : i32 to f32
    %12 = vector.broadcast %11 : f32 to vector<1x16x8xf32>
    %13 = arith.mulf %8, %12 : vector<1x16x8xf32>
    %c0_7 = arith.constant 0 : index
    %c0_8 = arith.constant 0 : index
    %c0_9 = arith.constant 0 : index
    %c0_10 = arith.constant 0 : index
    %14 = vector.load %arg2[%c0_7, %c0_8, %c0_9, %c0_10] : memref<1x8x16x8xf32, #tpu.memory_space<vmem>>, vector<1x8x16x8xf32>
    %15 = vector.shape_cast %14 : vector<1x8x16x8xf32> to vector<8x16x8xf32>
    %16 = tpu.concatenate %6, %15, %13 in 0 : vector<1x16x8xf32>, vector<8x16x8xf32>, vector<1x16x8xf32> -> vector<10x16x8xf32>
    %cst = arith.constant 0.000000e+00 : f32
    %17 = vector.broadcast %cst : f32 to vector<10x1x8xf32>
    %cst_11 = arith.constant 0.000000e+00 : f32
    %18 = vector.broadcast %cst_11 : f32 to vector<10x7x8xf32>
    %19 = tpu.concatenate %17, %16, %18 in 1 : vector<10x1x8xf32>, vector<10x16x8xf32>, vector<10x7x8xf32> -> vector<10x24x8xf32>
    %20 = vector.shape_cast %19 : vector<10x24x8xf32> to vector<240x8xf32>
    %21 = vector.extract_strided_slice %20 {offsets = [0, 0], sizes = [192, 8], strides = [1, 1]} : vector<240x8xf32> to vector<192x8xf32>
    %c0_12 = arith.constant 0 : index
    %c0_13 = arith.constant 0 : index
    %c0_14 = arith.constant 0 : index
    %22 = vector.load %arg5[%c0_12, %c0_13, %c0_14] : memref<9x8x32xf32, #tpu.memory_space<vmem>>, vector<1x8x32xf32>
    %23 = vector.shape_cast %22 : vector<1x8x32xf32> to vector<8x32xf32>
    %cst_15 = arith.constant dense<0.000000e+00> : vector<192x32xf32>
    %24 = tpu.matmul %21, %23, %cst_15 {dimension_numbers = #tpu.dot_dimension_numbers<[1], [0], [0], [1], [0, 0, 1, 1], [], []>} : vector<192x8xf32>, vector<8x32xf32>, vector<192x32xf32> -> vector<192x32xf32>
    %25 = vector.extract_strided_slice %20 {offsets = [24, 0], sizes = [192, 8], strides = [1, 1]} : vector<240x8xf32> to vector<192x8xf32>
    %c3 = arith.constant 3 : index
    %c0_16 = arith.constant 0 : index
    %c0_17 = arith.constant 0 : index
    %26 = vector.load %arg5[%c3, %c0_16, %c0_17] : memref<9x8x32xf32, #tpu.memory_space<vmem>>, vector<1x8x32xf32>
    %27 = vector.shape_cast %26 : vector<1x8x32xf32> to vector<8x32xf32>
    %cst_18 = arith.constant dense<0.000000e+00> : vector<192x32xf32>
    %28 = tpu.matmul %25, %27, %cst_18 {dimension_numbers = #tpu.dot_dimension_numbers<[1], [0], [0], [1], [0, 0, 1, 1], [], []>} : vector<192x8xf32>, vector<8x32xf32>, vector<192x32xf32> -> vector<192x32xf32>
    %29 = arith.addf %24, %28 : vector<192x32xf32>
    %30 = vector.extract_strided_slice %20 {offsets = [48, 0], sizes = [192, 8], strides = [1, 1]} : vector<240x8xf32> to vector<192x8xf32>
    %c6 = arith.constant 6 : index
    %c0_19 = arith.constant 0 : index
    %c0_20 = arith.constant 0 : index
    %31 = vector.load %arg5[%c6, %c0_19, %c0_20] : memref<9x8x32xf32, #tpu.memory_space<vmem>>, vector<1x8x32xf32>
    %32 = vector.shape_cast %31 : vector<1x8x32xf32> to vector<8x32xf32>
    %cst_21 = arith.constant dense<0.000000e+00> : vector<192x32xf32>
    %33 = tpu.matmul %30, %32, %cst_21 {dimension_numbers = #tpu.dot_dimension_numbers<[1], [0], [0], [1], [0, 0, 1, 1], [], []>} : vector<192x8xf32>, vector<8x32xf32>, vector<192x32xf32> -> vector<192x32xf32>
    %34 = arith.addf %29, %33 : vector<192x32xf32>
    %c239_i32 = arith.constant 239 : i32
    %35 = tpu.dynamic_rotate %20 by %c239_i32 dim 0 : vector<240x8xf32>, i32 -> vector<240x8xf32>
    %36 = vector.extract_strided_slice %35 {offsets = [0, 0], sizes = [192, 8], strides = [1, 1]} : vector<240x8xf32> to vector<192x8xf32>
    %c1 = arith.constant 1 : index
    %c0_22 = arith.constant 0 : index
    %c0_23 = arith.constant 0 : index
    %37 = vector.load %arg5[%c1, %c0_22, %c0_23] : memref<9x8x32xf32, #tpu.memory_space<vmem>>, vector<1x8x32xf32>
    %38 = vector.shape_cast %37 : vector<1x8x32xf32> to vector<8x32xf32>
    %cst_24 = arith.constant dense<0.000000e+00> : vector<192x32xf32>
    %39 = tpu.matmul %36, %38, %cst_24 {dimension_numbers = #tpu.dot_dimension_numbers<[1], [0], [0], [1], [0, 0, 1, 1], [], []>} : vector<192x8xf32>, vector<8x32xf32>, vector<192x32xf32> -> vector<192x32xf32>
    %40 = vector.extract_strided_slice %35 {offsets = [24, 0], sizes = [192, 8], strides = [1, 1]} : vector<240x8xf32> to vector<192x8xf32>
    %c4 = arith.constant 4 : index
    %c0_25 = arith.constant 0 : index
    %c0_26 = arith.constant 0 : index
    %41 = vector.load %arg5[%c4, %c0_25, %c0_26] : memref<9x8x32xf32, #tpu.memory_space<vmem>>, vector<1x8x32xf32>
    %42 = vector.shape_cast %41 : vector<1x8x32xf32> to vector<8x32xf32>
    %cst_27 = arith.constant dense<0.000000e+00> : vector<192x32xf32>
    %43 = tpu.matmul %40, %42, %cst_27 {dimension_numbers = #tpu.dot_dimension_numbers<[1], [0], [0], [1], [0, 0, 1, 1], [], []>} : vector<192x8xf32>, vector<8x32xf32>, vector<192x32xf32> -> vector<192x32xf32>
    %44 = arith.addf %39, %43 : vector<192x32xf32>
    %45 = vector.extract_strided_slice %35 {offsets = [48, 0], sizes = [192, 8], strides = [1, 1]} : vector<240x8xf32> to vector<192x8xf32>
    %c7 = arith.constant 7 : index
    %c0_28 = arith.constant 0 : index
    %c0_29 = arith.constant 0 : index
    %46 = vector.load %arg5[%c7, %c0_28, %c0_29] : memref<9x8x32xf32, #tpu.memory_space<vmem>>, vector<1x8x32xf32>
    %47 = vector.shape_cast %46 : vector<1x8x32xf32> to vector<8x32xf32>
    %cst_30 = arith.constant dense<0.000000e+00> : vector<192x32xf32>
    %48 = tpu.matmul %45, %47, %cst_30 {dimension_numbers = #tpu.dot_dimension_numbers<[1], [0], [0], [1], [0, 0, 1, 1], [], []>} : vector<192x8xf32>, vector<8x32xf32>, vector<192x32xf32> -> vector<192x32xf32>
    %49 = arith.addf %44, %48 : vector<192x32xf32>
    %50 = arith.addf %34, %49 : vector<192x32xf32>
    %c238_i32 = arith.constant 238 : i32
    %51 = tpu.dynamic_rotate %20 by %c238_i32 dim 0 : vector<240x8xf32>, i32 -> vector<240x8xf32>
    %52 = vector.extract_strided_slice %51 {offsets = [0, 0], sizes = [192, 8], strides = [1, 1]} : vector<240x8xf32> to vector<192x8xf32>
    %c2 = arith.constant 2 : index
    %c0_31 = arith.constant 0 : index
    %c0_32 = arith.constant 0 : index
    %53 = vector.load %arg5[%c2, %c0_31, %c0_32] : memref<9x8x32xf32, #tpu.memory_space<vmem>>, vector<1x8x32xf32>
    %54 = vector.shape_cast %53 : vector<1x8x32xf32> to vector<8x32xf32>
    %cst_33 = arith.constant dense<0.000000e+00> : vector<192x32xf32>
    %55 = tpu.matmul %52, %54, %cst_33 {dimension_numbers = #tpu.dot_dimension_numbers<[1], [0], [0], [1], [0, 0, 1, 1], [], []>} : vector<192x8xf32>, vector<8x32xf32>, vector<192x32xf32> -> vector<192x32xf32>
    %56 = vector.extract_strided_slice %51 {offsets = [24, 0], sizes = [192, 8], strides = [1, 1]} : vector<240x8xf32> to vector<192x8xf32>
    %c5 = arith.constant 5 : index
    %c0_34 = arith.constant 0 : index
    %c0_35 = arith.constant 0 : index
    %57 = vector.load %arg5[%c5, %c0_34, %c0_35] : memref<9x8x32xf32, #tpu.memory_space<vmem>>, vector<1x8x32xf32>
    %58 = vector.shape_cast %57 : vector<1x8x32xf32> to vector<8x32xf32>
    %cst_36 = arith.constant dense<0.000000e+00> : vector<192x32xf32>
    %59 = tpu.matmul %56, %58, %cst_36 {dimension_numbers = #tpu.dot_dimension_numbers<[1], [0], [0], [1], [0, 0, 1, 1], [], []>} : vector<192x8xf32>, vector<8x32xf32>, vector<192x32xf32> -> vector<192x32xf32>
    %60 = arith.addf %55, %59 : vector<192x32xf32>
    %61 = vector.extract_strided_slice %51 {offsets = [48, 0], sizes = [192, 8], strides = [1, 1]} : vector<240x8xf32> to vector<192x8xf32>
    %c8 = arith.constant 8 : index
    %c0_37 = arith.constant 0 : index
    %c0_38 = arith.constant 0 : index
    %62 = vector.load %arg5[%c8, %c0_37, %c0_38] : memref<9x8x32xf32, #tpu.memory_space<vmem>>, vector<1x8x32xf32>
    %63 = vector.shape_cast %62 : vector<1x8x32xf32> to vector<8x32xf32>
    %cst_39 = arith.constant dense<0.000000e+00> : vector<192x32xf32>
    %64 = tpu.matmul %61, %63, %cst_39 {dimension_numbers = #tpu.dot_dimension_numbers<[1], [0], [0], [1], [0, 0, 1, 1], [], []>} : vector<192x8xf32>, vector<8x32xf32>, vector<192x32xf32> -> vector<192x32xf32>
    %65 = arith.addf %60, %64 : vector<192x32xf32>
    %66 = arith.addf %50, %65 : vector<192x32xf32>
    %c0_40 = arith.constant 0 : index
    %c0_41 = arith.constant 0 : index
    %67 = vector.load %arg6[%c0_40, %c0_41] : memref<1x32xf32, #tpu.memory_space<vmem>>, vector<1x32xf32>
    %68 = vector.broadcast %67 : vector<1x32xf32> to vector<192x32xf32>
    %69 = arith.mulf %66, %68 : vector<192x32xf32>
    %c0_42 = arith.constant 0 : index
    %c0_43 = arith.constant 0 : index
    %70 = vector.load %arg7[%c0_42, %c0_43] : memref<1x32xf32, #tpu.memory_space<vmem>>, vector<1x32xf32>
    %71 = vector.broadcast %70 : vector<1x32xf32> to vector<192x32xf32>
    %72 = arith.addf %69, %71 : vector<192x32xf32>
    %73 = arith.negf %72 : vector<192x32xf32>
    %74 = math.exp %73 : vector<192x32xf32>
    %cst_44 = arith.constant 1.000000e+00 : f32
    %75 = vector.broadcast %cst_44 : f32 to vector<192x32xf32>
    %76 = arith.addf %75, %74 : vector<192x32xf32>
    %77 = arith.divf %75, %76 : vector<192x32xf32>
    %78 = arith.mulf %72, %77 : vector<192x32xf32>
    %79 = vector.shape_cast %78 : vector<192x32xf32> to vector<8x24x32xf32>
    %80 = vector.extract_strided_slice %79 {offsets = [0, 0, 0], sizes = [8, 16, 32], strides = [1, 1, 1]} : vector<8x24x32xf32> to vector<8x16x32xf32>
    %c0_45 = arith.constant 0 : index
    %c0_46 = arith.constant 0 : index
    %c0_47 = arith.constant 0 : index
    %c0_48 = arith.constant 0 : index
    %81 = vector.load %arg8[%c0_45, %c0_46, %c0_47, %c0_48] : memref<1x8x16x32xf32, #tpu.memory_space<vmem>>, vector<1x8x16x32xf32>
    %82 = vector.shape_cast %81 : vector<1x8x16x32xf32> to vector<8x16x32xf32>
    %83 = vector.shape_cast %80 : vector<8x16x32xf32> to vector<1x8x16x32xf32>
    tpu.vector_store %arg8[%c0_45, %c0_46, %c0_47, %c0_48], %83 {strides = array<i32>} : memref<1x8x16x32xf32, #tpu.memory_space<vmem>>, vector<1x8x16x32xf32>,
    return
  }
  func.func @transform_0(%arg0: i32, %arg1: i32) -> (i32, i32, i32, i32) {
    %c0_i32 = arith.constant 0 : i32
    %c0_i32_0 = arith.constant 0 : i32
    %c0_i32_1 = arith.constant 0 : i32
    return %arg0, %arg1, %c0_i32, %c0_i32_0 : i32, i32, i32, i32
  }
  func.func @transform_1(%arg0: i32, %arg1: i32) -> (i32, i32, i32, i32) {
    %c8_i32 = arith.constant 8 : i32
    %0 = arith.muli %arg1, %c8_i32 : i32
    %c1_i32 = arith.constant 1 : i32
    %1 = arith.subi %0, %c1_i32 : i32
    %c0_i32 = arith.constant 0 : i32
    %2 = arith.maxsi %1, %c0_i32 : i32
    %c0_i32_0 = arith.constant 0 : i32
    %c0_i32_1 = arith.constant 0 : i32
    %c0_i32_2 = arith.constant 0 : i32
    return %arg0, %2, %c0_i32_0, %c0_i32_1 : i32, i32, i32, i32
  }
  func.func @transform_2(%arg0: i32, %arg1: i32) -> (i32, i32, i32, i32) {
    %c1_i32 = arith.constant 1 : i32
    %0 = arith.addi %arg1, %c1_i32 : i32
    %c8_i32 = arith.constant 8 : i32
    %1 = arith.muli %0, %c8_i32 : i32
    %c15_i32 = arith.constant 15 : i32
    %2 = arith.minsi %1, %c15_i32 : i32
    %c0_i32 = arith.constant 0 : i32
    %c0_i32_0 = arith.constant 0 : i32
    %c0_i32_1 = arith.constant 0 : i32
    return %arg0, %2, %c0_i32, %c0_i32_0 : i32, i32, i32, i32
  }
  func.func @transform_3(%arg0: i32, %arg1: i32) -> (i32, i32, i32) {
    %c0_i32 = arith.constant 0 : i32
    %c0_i32_0 = arith.constant 0 : i32
    %c0_i32_1 = arith.constant 0 : i32
    %c0_i32_2 = arith.constant 0 : i32
    return %c0_i32, %c0_i32_0, %c0_i32_1 : i32, i32, i32
  }
  func.func @transform_4(%arg0: i32, %arg1: i32) -> (i32, i32) {
    %c0_i32 = arith.constant 0 : i32
    %c0_i32_0 = arith.constant 0 : i32
    %c0_i32_1 = arith.constant 0 : i32
    return %c0_i32, %c0_i32_0 : i32, i32
  }
  func.func @transform_5(%arg0: i32, %arg1: i32) -> (i32, i32) {
    %c0_i32 = arith.constant 0 : i32
    %c0_i32_0 = arith.constant 0 : i32
    %c0_i32_1 = arith.constant 0 : i32
    return %c0_i32, %c0_i32_0 : i32, i32
  }
  func.func @transform_6(%arg0: i32, %arg1: i32) -> (i32, i32, i32, i32) {
    %c0_i32 = arith.constant 0 : i32
    %c0_i32_0 = arith.constant 0 : i32
    %c0_i32_1 = arith.constant 0 : i32
    return %arg0, %arg1, %c0_i32, %c0_i32_0 : i32, i32, i32, i32
  }
}

</mosaic_0001>

<llo_original>
// kernel: tpu_custom_call.1
$region0: #{tpu_custom_call.1}
  #allocation0 [shape = 'u32[]', space=smem, size = 0x4, offset = 0x4, fixed_abs, tag = 'smem constant byte address 0x4 - core index']
  #allocation1 [shape = 'u32[72,128]{1,0:T(1,128)}', space=vmem, size = 0x9000, scoped, tag = 'internal scratch']
  %s0 = inlined_call_operand.vmem [shape: f32[2,16,16,8], index: 0, kind: input, shape index: {}]
  %s1 = inlined_call_operand.vmem [shape: f32[2,16,16,8], index: 1, kind: input, shape index: {}]
  %s2 = inlined_call_operand.vmem [shape: f32[2,16,16,8], index: 2, kind: input, shape index: {}]
  %s3 = inlined_call_operand.vmem [shape: f32[9,8,32], index: 3, kind: input, shape index: {}]
  %s4 = inlined_call_operand.vmem [shape: f32[1,32], index: 4, kind: input, shape index: {}]
  %s5 = inlined_call_operand.vmem [shape: f32[1,32], index: 5, kind: input, shape index: {}]
  %s6 = inlined_call_operand.hbm [shape: f32[2,16,16,32], index: 6, kind: output, shape index: {}]
  %s7 = sld [smem:[#allocation0]]
  $region57: #{tpu_custom_call.1} parent=0
    _
  %s9 = ssub.s32 1, %s7
  %s10 = scalar_select 0, %s9, %s7
  $region1: #{tpu_custom_call.1} parent=0
    #allocation2 [shape = 'u8[131072]{0}', space=vmem, size = 0x20000, scoped, tag = 'output window, operand 0']
    #allocation3 [shape = 's32[2]{0}', space=sflag, size = 0x8, scoped, tag = 'scoped memory for tpu_custom_call.1']
    %11 = vsyncpa [#allocation3], 0
    %s12 = scalar_lea.sflag [#allocation3], 1
    %13 = vsyncpa %s12, 0
    loop: start=0, step=1, limit=6
    $region2: #{tpu_custom_call.1} parent=1 // loop_pre_header
      _
    $region3: #{tpu_custom_call.1} parent=1 // loop_header
      %s15 = sphi 0, %s19
      %p16 = scmp.ge.s32.totalorder %s15, 6
      %s22 = sphi 0, %s34
      %s23 = sphi 0, %s30
      %s24 = sphi 0, %s22
      %s25 = sphi 0, %s23
      %s26 = sphi 0, %s24
      %s27 = sphi 0, %s25
      %s39 = sphi 0, %s41
      %s42 = sphi 0, %s39
      %s43 = sphi 0, %s42
      %s59 = sphi 0, %s43
      %s75 = sphi 0, %s77
      %s78 = sphi 0, %s75
      %s79 = sphi 0, %s78
      %s95 = sphi 0, %s79
      %s111 = sphi 0, %s113
      %s114 = sphi 0, %s111
      %s115 = sphi 0, %s114
      %s131 = sphi 0, %s115
      %s135 = sphi 0, %s135
      %s137 = sphi 0, %s135
      %s138 = sphi 0, %s137
      %s152 = sphi 0, %s138
      %s156 = sphi 0, %s156
      %s158 = sphi 0, %s156
      %s159 = sphi 0, %s158
      %s173 = sphi 0, %s159
      %s177 = sphi 0, %s177
      %s179 = sphi 0, %s177
      %s180 = sphi 0, %s179
      %s194 = sphi 0, %s180
      %s202 = sphi 0, %s204
      %s205 = sphi 0, %s202
      %s206 = sphi 0, %s205
      %s222 = sphi 0, %s206
    $region4: #{tpu_custom_call.1} parent=1 // loop_header_branch
      %18 = sbr.rel (%p16) target = $region8
    $region5: #{tpu_custom_call.1} parent=1 // loop_body
      %s20 = ssub.s32 %s15, 1
      %s21 = ssub.s32 %s15, 2
      %s28 = sadd.s32 1, %s23
      %p29 = scmp.ge.s32.totalorder %s28, 2
      %s30 = scalar_select %p29, 0, %s28
      %s31 = sadd.s32 1, %s22
      %s32 = scalar_select %p29, %s31, %s22
      %p33 = scmp.ge.s32.totalorder %s32, 2
      %s34 = scalar_select %p33, 0, %s32
      %s35 = ssub.s32 %s22, %s34
      %s36 = ssub.s32 %s23, %s30
      %s37 = sor.u32 %s35, %s36
      %p38 = scmp.eq.s32.totalorder %s37, 0
      %s40 = sadd.s32 %s39, 1
      %s41 = scalar_select %p38, %s39, %s40
      %p44 = pneg %p38
      %p45 = scmp.eq.s32.totalorder %s15, 3
      %p46 = por %p44, %p45
      %p47 = scmp.ne.s32.totalorder %s39, %s42
      %p48 = scmp.eq.s32.totalorder %s15, 0
      %p49 = por %p47, %p48
      %p50 = scmp.ne.s32.totalorder %s39, %s42
      %p51 = scmp.eq.s32.totalorder %s20, 3
      %p52 = por %p50, %p51
      %p53 = scmp.ne.s32.totalorder %s42, %s43
      %p54 = scmp.eq.s32.totalorder %s20, 0
      %p55 = por %p53, %p54
      %p56 = scmp.ne.s32.totalorder %s42, %s43
      %p57 = scmp.eq.s32.totalorder %s21, 3
      %p58 = por %p56, %p57
      %p60 = scmp.ne.s32.totalorder %s43, %s59
      %p61 = scmp.eq.s32.totalorder %s21, 0
      %p62 = por %p60, %p61
      %s63 = smul.u32 %s23, 8
      %s64 = ssub.s32 %s63, 1
      %p65 = scmp.gt.s32.totalorder %s64, 0
      %s66 = scalar_select %p65, %s64, 0
      %s67 = smul.u32 %s30, 8
      %s68 = ssub.s32 %s67, 1
      %p69 = scmp.gt.s32.totalorder %s68, 0
      %s70 = scalar_select %p69, %s68, 0
      %s71 = ssub.s32 %s22, %s34
      %s72 = ssub.s32 %s66, %s70
      %s73 = sor.u32 %s71, %s72
      %p74 = scmp.eq.s32.totalorder %s73, 0
      %s76 = sadd.s32 %s75, 1
      %s77 = scalar_select %p74, %s75, %s76
      %p80 = pneg %p74
      %p81 = scmp.eq.s32.totalorder %s15, 3
      %p82 = por %p80, %p81
      %p83 = scmp.ne.s32.totalorder %s75, %s78
      %p84 = scmp.eq.s32.totalorder %s15, 0
      %p85 = por %p83, %p84
      %p86 = scmp.ne.s32.totalorder %s75, %s78
      %p87 = scmp.eq.s32.totalorder %s20, 3
      %p88 = por %p86, %p87
      %p89 = scmp.ne.s32.totalorder %s78, %s79
      %p90 = scmp.eq.s32.totalorder %s20, 0
      %p91 = por %p89, %p90
      %p92 = scmp.ne.s32.totalorder %s78, %s79
      %p93 = scmp.eq.s32.totalorder %s21, 3
      %p94 = por %p92, %p93
      %p96 = scmp.ne.s32.totalorder %s79, %s95
      %p97 = scmp.eq.s32.totalorder %s21, 0
      %p98 = por %p96, %p97
      %s99 = sadd.s32 %s23, 1
      %s100 = smul.u32 %s99, 8
      %p101 = scmp.lt.s32.totalorder %s100, 15
      %s102 = scalar_select %p101, %s100, 15
      %s103 = sadd.s32 %s30, 1
      %s104 = smul.u32 %s103, 8
      %p105 = scmp.lt.s32.totalorder %s104, 15
      %s106 = scalar_select %p105, %s104, 15
      %s107 = ssub.s32 %s22, %s34
      %s108 = ssub.s32 %s102, %s106
      %s109 = sor.u32 %s107, %s108
      %p110 = scmp.eq.s32.totalorder %s109, 0
      %s112 = sadd.s32 %s111, 1
      %s113 = scalar_select %p110, %s111, %s112
      %p116 = pneg %p110
      %p117 = scmp.eq.s32.totalorder %s15, 3
      %p118 = por %p116, %p117
      %p119 = scmp.ne.s32.totalorder %s111, %s114
      %p120 = scmp.eq.s32.totalorder %s15, 0
      %p121 = por %p119, %p120
      %p122 = scmp.ne.s32.totalorder %s111, %s114
      %p123 = scmp.eq.s32.totalorder %s20, 3
      %p124 = por %p122, %p123
      %p125 = scmp.ne.s32.totalorder %s114, %s115
      %p126 = scmp.eq.s32.totalorder %s20, 0
      %p127 = por %p125, %p126
      %p128 = scmp.ne.s32.totalorder %s114, %s115
      %p129 = scmp.eq.s32.totalorder %s21, 3
      %p130 = por %p128, %p129
      %p132 = scmp.ne.s32.totalorder %s115, %s131
      %p133 = scmp.eq.s32.totalorder %s21, 0
      %p134 = por %p132, %p133
      %s136 = sadd.s32 %s135, 1
      %p139 = scmp.eq.s32.totalorder %s15, 3
      %p140 = scmp.ne.s32.totalorder %s135, %s137
      %p141 = scmp.eq.s32.totalorder %s15, 0
      %p142 = por %p140, %p141
      %p143 = scmp.ne.s32.totalorder %s135, %s137
      %p144 = scmp.eq.s32.totalorder %s20, 3
      %p145 = por %p143, %p144
      %p146 = scmp.ne.s32.totalorder %s137, %s138
      %p147 = scmp.eq.s32.totalorder %s20, 0
      %p148 = por %p146, %p147
      %p149 = scmp.ne.s32.totalorder %s137, %s138
      %p150 = scmp.eq.s32.totalorder %s21, 3
      %p151 = por %p149, %p150
      %p153 = scmp.ne.s32.totalorder %s138, %s152
      %p154 = scmp.eq.s32.totalorder %s21, 0
      %p155 = por %p153, %p154
      %s157 = sadd.s32 %s156, 1
      %p160 = scmp.eq.s32.totalorder %s15, 3
      %p161 = scmp.ne.s32.totalorder %s156, %s158
      %p162 = scmp.eq.s32.totalorder %s15, 0
      %p163 = por %p161, %p162
      %p164 = scmp.ne.s32.totalorder %s156, %s158
      %p165 = scmp.eq.s32.totalorder %s20, 3
      %p166 = por %p164, %p165
      %p167 = scmp.ne.s32.totalorder %s158, %s159
      %p168 = scmp.eq.s32.totalorder %s20, 0
      %p169 = por %p167, %p168
      %p170 = scmp.ne.s32.totalorder %s158, %s159
      %p171 = scmp.eq.s32.totalorder %s21, 3
      %p172 = por %p170, %p171
      %p174 = scmp.ne.s32.totalorder %s159, %s173
      %p175 = scmp.eq.s32.totalorder %s21, 0
      %p176 = por %p174, %p175
      %s178 = sadd.s32 %s177, 1
      %p181 = scmp.eq.s32.totalorder %s15, 3
      %p182 = scmp.ne.s32.totalorder %s177, %s179
      %p183 = scmp.eq.s32.totalorder %s15, 0
      %p184 = por %p182, %p183
      %p185 = scmp.ne.s32.totalorder %s177, %s179
      %p186 = scmp.eq.s32.totalorder %s20, 3
      %p187 = por %p185, %p186
      %p188 = scmp.ne.s32.totalorder %s179, %s180
      %p189 = scmp.eq.s32.totalorder %s20, 0
      %p190 = por %p188, %p189
      %p191 = scmp.ne.s32.totalorder %s179, %s180
      %p192 = scmp.eq.s32.totalorder %s21, 3
      %p193 = por %p191, %p192
      %p195 = scmp.ne.s32.totalorder %s180, %s194
      %p196 = scmp.eq.s32.totalorder %s21, 0
      %p197 = por %p195, %p196
      %s198 = ssub.s32 %s22, %s34
      %s199 = ssub.s32 %s23, %s30
      %s200 = sor.u32 %s198, %s199
      %p201 = scmp.eq.s32.totalorder %s200, 0
      %s203 = sadd.s32 %s202, 1
      %s204 = scalar_select %p201, %s202, %s203
      %p207 = pneg %p201
      %p208 = scmp.eq.s32.totalorder %s15, 3
      %p209 = por %p207, %p208
      %p210 = scmp.ne.s32.totalorder %s202, %s205
      %p211 = scmp.eq.s32.totalorder %s15, 0
      %p212 = por %p210, %p211
      %p213 = scmp.ne.s32.totalorder %s202, %s205
      %p214 = scmp.eq.s32.totalorder %s20, 3
      %p215 = por %p213, %p214
      %p216 = scmp.ne.s32.totalorder %s205, %s206
      %p217 = scmp.eq.s32.totalorder %s20, 0
      %p218 = por %p216, %p217
      %p219 = scmp.ne.s32.totalorder %s205, %s206
      %p220 = scmp.eq.s32.totalorder %s21, 3
      %p221 = por %p219, %p220
      %p223 = scmp.ne.s32.totalorder %s206, %s222
      %p224 = scmp.eq.s32.totalorder %s21, 0
      %p225 = por %p223, %p224
      %p226 = scmp.le.s32.totalorder 1, %s15
      %p227 = scmp.lt.s32.totalorder %s15, 5
      %p228 = pnand %p226, %p227
      %p229 = pneg %p228
      // Predicated region
      $region9: #{tpu_custom_call.1} parent=5 // pred_check
        _
      $region10: #{tpu_custom_call.1} parent=5 // pred_check_branch
        %231 = sbr.rel (%p228) target = $region12
      $region11: #{tpu_custom_call.1} parent=5 // pred_region
        %s232 = ssub.s32 %s15, 1
        // Predicated region
        $region13: #{tpu_custom_call.1} parent=11 // pred_check
          %p233 = pneg %p148
        $region14: #{tpu_custom_call.1} parent=11 // pred_check_branch
          %235 = sbr.rel (%p233) target = $region16
        $region15: #{tpu_custom_call.1} parent=11 // pred_region
          _
        $region16: #{tpu_custom_call.1} parent=11 // pred_fallthru
          _
        // Predicated region
        $region17: #{tpu_custom_call.1} parent=11 // pred_check
          %p236 = pneg %p169
        $region18: #{tpu_custom_call.1} parent=11 // pred_check_branch
          %238 = sbr.rel (%p236) target = $region20
        $region19: #{tpu_custom_call.1} parent=11 // pred_region
          _
        $region20: #{tpu_custom_call.1} parent=11 // pred_fallthru
          _
        // Predicated region
        $region21: #{tpu_custom_call.1} parent=11 // pred_check
          %p239 = pneg %p190
        $region22: #{tpu_custom_call.1} parent=11 // pred_check_branch
          %241 = sbr.rel (%p239) target = $region24
        $region23: #{tpu_custom_call.1} parent=11 // pred_region
          _
        $region24: #{tpu_custom_call.1} parent=11 // pred_fallthru
          _
      $region12: #{tpu_custom_call.1} parent=5 // pred_fallthru
        _
      %p242 = scmp.lt.s32.totalorder %s15, 4
      // Predicated region
      $region25: #{tpu_custom_call.1} parent=5 // pred_check
        %p243 = pneg %p242
      $region26: #{tpu_custom_call.1} parent=5 // pred_check_branch
        %245 = sbr.rel (%p243) target = $region28
      $region27: #{tpu_custom_call.1} parent=5 // pred_region
        // Predicated region
        $region29: #{tpu_custom_call.1} parent=27 // pred_check
          %p246 = pneg %p49
        $region30: #{tpu_custom_call.1} parent=27 // pred_check_branch
          %248 = sbr.rel (%p246) target = $region32
        $region31: #{tpu_custom_call.1} parent=27 // pred_region
          %s249 = smul.u32 8, %s23
          %p250 = scmp.lt.s32.totalorder %s22, 1
          %s251 = scalar_select %p250, %s22, 1
          %p252 = scmp.lt.s32.totalorder %s249, 15
          %s253 = scalar_select %p252, %s249, 15
          %s254 = smul.addr %s253, 2
          %s255 = smul.addr %s251, 32
          %s256 = sadd.s32 %s254, %s255
          %s257 = smul.addr %s256, 8
          %s258 = scalar_lea.vmem %s0, %s257
          %s259 = smul.u32 8, %s23
        $region32: #{tpu_custom_call.1} parent=27 // pred_fallthru
          _
        // Predicated region
        $region33: #{tpu_custom_call.1} parent=27 // pred_check
          %p260 = pneg %p85
        $region34: #{tpu_custom_call.1} parent=27 // pred_check_branch
          %262 = sbr.rel (%p260) target = $region36
        $region35: #{tpu_custom_call.1} parent=27 // pred_region
          %s263 = smul.u32 %s23, 8
          %s264 = ssub.s32 %s263, 1
          %p265 = scmp.gt.s32.totalorder %s264, 0
          %s266 = scalar_select %p265, %s264, 0
          %p267 = scmp.lt.s32.totalorder %s22, 1
          %s268 = scalar_select %p267, %s22, 1
          %p269 = scmp.lt.s32.totalorder %s266, 15
          %s270 = scalar_select %p269, %s266, 15
          %s271 = smul.addr %s270, 2
          %s272 = smul.addr %s268, 32
          %s273 = sadd.s32 %s271, %s272
          %s274 = smul.addr %s273, 8
          %s275 = scalar_lea.vmem %s1, %s274
          %s276 = smul.u32 %s23, 8
          %s277 = ssub.s32 %s276, 1
          %p278 = scmp.gt.s32.totalorder %s277, 0
          %s279 = scalar_select %p278, %s277, 0
        $region36: #{tpu_custom_call.1} parent=27 // pred_fallthru
          _
        // Predicated region
        $region37: #{tpu_custom_call.1} parent=27 // pred_check
          %p280 = pneg %p121
        $region38: #{tpu_custom_call.1} parent=27 // pred_check_branch
          %282 = sbr.rel (%p280) target = $region40
        $region39: #{tpu_custom_call.1} parent=27 // pred_region
          %s283 = sadd.s32 %s23, 1
          %s284 = smul.u32 %s283, 8
          %p285 = scmp.lt.s32.totalorder %s284, 15
          %s286 = scalar_select %p285, %s284, 15
          %p287 = scmp.lt.s32.totalorder %s22, 1
          %s288 = scalar_select %p287, %s22, 1
          %p289 = scmp.lt.s32.totalorder %s286, 15
          %s290 = scalar_select %p289, %s286, 15
          %s291 = smul.addr %s290, 2
          %s292 = smul.addr %s288, 32
          %s293 = sadd.s32 %s291, %s292
          %s294 = smul.addr %s293, 8
          %s295 = scalar_lea.vmem %s2, %s294
          %s296 = sadd.s32 %s23, 1
          %s297 = smul.u32 %s296, 8
          %p298 = scmp.lt.s32.totalorder %s297, 15
          %s299 = scalar_select %p298, %s297, 15
        $region40: #{tpu_custom_call.1} parent=27 // pred_fallthru
          _
      $region28: #{tpu_custom_call.1} parent=5 // pred_fallthru
        _
      %p300 = scmp.le.s32.totalorder 1, %s15
      %p301 = scmp.lt.s32.totalorder %s15, 5
      %p302 = pnand %p300, %p301
      %p303 = pneg %p302
      // Predicated region
      $region41: #{tpu_custom_call.1} parent=5 // pred_check
        _
      $region42: #{tpu_custom_call.1} parent=5 // pred_check_branch
        %305 = sbr.rel (%p302) target = $region44
      $region43: #{tpu_custom_call.1} parent=5 // pred_region
        %s306 = ssub.s32 %s15, 1
        %s307 = smul.u32 8, %s25
        %p308 = scmp.lt.s32.totalorder %s24, 1
        %s309 = scalar_select %p308, %s24, 1
        %p310 = scmp.lt.s32.totalorder %s307, 15
        %s311 = scalar_select %p310, %s307, 15
        %s312 = smul.addr %s311, 2
        %s313 = smul.addr %s309, 32
        %s314 = sadd.s32 %s312, %s313
        %s315 = smul.addr %s314, 8
        %s316 = scalar_lea.vmem %s0, %s315
        %p317 = pneg %p55
        %p318 = pneg %p52
        %s319 = smul.u32 %s25, 8
        %s320 = ssub.s32 %s319, 1
        %p321 = scmp.gt.s32.totalorder %s320, 0
        %s322 = scalar_select %p321, %s320, 0
        %p323 = scmp.lt.s32.totalorder %s24, 1
        %s324 = scalar_select %p323, %s24, 1
        %p325 = scmp.lt.s32.totalorder %s322, 15
        %s326 = scalar_select %p325, %s322, 15
        %s327 = smul.addr %s326, 2
        %s328 = smul.addr %s324, 32
        %s329 = sadd.s32 %s327, %s328
        %s330 = smul.addr %s329, 8
        %s331 = scalar_lea.vmem %s1, %s330
        %p332 = pneg %p91
        %p333 = pneg %p88
        %s334 = sadd.s32 %s25, 1
        %s335 = smul.u32 %s334, 8
        %p336 = scmp.lt.s32.totalorder %s335, 15
        %s337 = scalar_select %p336, %s335, 15
        %p338 = scmp.lt.s32.totalorder %s24, 1
        %s339 = scalar_select %p338, %s24, 1
        %p340 = scmp.lt.s32.totalorder %s337, 15
        %s341 = scalar_select %p340, %s337, 15
        %s342 = smul.addr %s341, 2
        %s343 = smul.addr %s339, 32
        %s344 = sadd.s32 %s342, %s343
        %s345 = smul.addr %s344, 8
        %s346 = scalar_lea.vmem %s2, %s345
        %p347 = pneg %p127
        %p348 = pneg %p124
        %p349 = pneg %p148
        %p350 = pneg %p145
        %p351 = pneg %p169
        %p352 = pneg %p166
        %p353 = pneg %p190
        %p354 = pneg %p187
        %p355 = pneg %p218
        %p356 = pneg %p215
        %s357 = sand.u32 %s205, 1
        %s358 = scalar_lea.sflag [#allocation3], %s357
        %s359 = sand.u32 %s205, 1
        %s360 = smul.addr %s359, 128
        %s361 = scalar_lea.vmem [#allocation2], %s360
        %s362 = smul.u32 8, %s25
        %p363 = scmp.lt.s32.totalorder %s24, 1
        %s364 = scalar_select %p363, %s24, 1
        %p365 = scmp.lt.s32.totalorder %s362, 15
        %s366 = scalar_select %p365, %s362, 15
        %s367 = smul.addr %s366, 2
        %s368 = smul.addr %s364, 32
        %s369 = sadd.s32 %s367, %s368
        %s370 = smul.addr %s369, 8
        %s371 = scalar_lea.vmem %s0, %s370
        %s372 = smul.u32 8, %s25
        %s373 = smul.u32 %s25, 8
        %s374 = ssub.s32 %s373, 1
        %p375 = scmp.gt.s32.totalorder %s374, 0
        %s376 = scalar_select %p375, %s374, 0
        %p377 = scmp.lt.s32.totalorder %s24, 1
        %s378 = scalar_select %p377, %s24, 1
        %p379 = scmp.lt.s32.totalorder %s376, 15
        %s380 = scalar_select %p379, %s376, 15
        %s381 = smul.addr %s380, 2
        %s382 = smul.addr %s378, 32
        %s383 = sadd.s32 %s381, %s382
        %s384 = smul.addr %s383, 8
        %s385 = scalar_lea.vmem %s1, %s384
        %s386 = smul.u32 %s25, 8
        %s387 = ssub.s32 %s386, 1
        %p388 = scmp.gt.s32.totalorder %s387, 0
        %s389 = scalar_select %p388, %s387, 0
        %s390 = sadd.s32 %s25, 1
        %s391 = smul.u32 %s390, 8
        %p392 = scmp.lt.s32.totalorder %s391, 15
        %s393 = scalar_select %p392, %s391, 15
        %p394 = scmp.lt.s32.totalorder %s24, 1
        %s395 = scalar_select %p394, %s24, 1
        %p396 = scmp.lt.s32.totalorder %s393, 15
        %s397 = scalar_select %p396, %s393, 15
        %s398 = smul.addr %s397, 2
        %s399 = smul.addr %s395, 32
        %s400 = sadd.s32 %s398, %s399
        %s401 = smul.addr %s400, 8
        %s402 = scalar_lea.vmem %s2, %s401
        %s403 = sadd.s32 %s25, 1
        %s404 = smul.u32 %s403, 8
        %p405 = scmp.lt.s32.totalorder %s404, 15
        %s406 = scalar_select %p405, %s404, 15
        %s407 = smul.u32 8, %s25
        %v408 = vld [vmem:[%s385] sm:$0xff]
        %v409 = vld [vmem:[%s385 + $0x8] sm:$0xff]
        %p410 = scmp.gt.s32.totalorder %s25, 0
        %s411 = scalar_select %p410, 1, 0
        %s412 = scvt.s32.f32 %s411
        %v413 = vstv %s412
        %v414 = vmul.f32 %v408, %v413
        %v415 = vmul.f32 %v409, %v413
        %v416 = vld [vmem:[%s402] sm:$0xff]
        %v417 = vld [vmem:[%s402 + $0x8] sm:$0xff]
        %p418 = scmp.lt.s32.totalorder %s25, 1
        %s419 = scalar_select %p418, 1, 0
        %s420 = scvt.s32.f32 %s419
        %v421 = vstv %s420
        %v422 = vmul.f32 %v416, %v421
        %v423 = vmul.f32 %v417, %v421
        %v424 = vld [vmem:[%s371] sm:$0xff]
        %v425 = vld [vmem:[%s371 + $0x8] sm:$0xff]
        %v426 = vld [vmem:[%s371 + $0x10] sm:$0xff]
        %v427 = vld [vmem:[%s371 + $0x18] sm:$0xff]
        %v428 = vld [vmem:[%s371 + $0x20] sm:$0xff]
        %v429 = vld [vmem:[%s371 + $0x28] sm:$0xff]
        %v430 = vld [vmem:[%s371 + $0x30] sm:$0xff]
        %v431 = vld [vmem:[%s371 + $0x38] sm:$0xff]
        %v432 = vld [vmem:[%s371 + $0x40] sm:$0xff]
        %v433 = vld [vmem:[%s371 + $0x48] sm:$0xff]
        %v434 = vld [vmem:[%s371 + $0x50] sm:$0xff]
        %v435 = vld [vmem:[%s371 + $0x58] sm:$0xff]
        %v436 = vld [vmem:[%s371 + $0x60] sm:$0xff]
        %v437 = vld [vmem:[%s371 + $0x68] sm:$0xff]
        %v438 = vld [vmem:[%s371 + $0x70] sm:$0xff]
        %v439 = vld [vmem:[%s371 + $0x78] sm:$0xff]
        %vm460 = vcmask 1040384
        %v461 = vrot.slane %v414, 7
        %v462 = vrot.slane %v415, 7
        %v463 = vsel %vm460, %v461, %v462
        %v464 = vrot.slane %v424, 7
        %v465 = vrot.slane %v425, 7
        %v466 = vsel %vm460, %v464, %v465
        %v467 = vrot.slane %v426, 7
        %v468 = vrot.slane %v427, 7
        %v469 = vsel %vm460, %v467, %v468
        %v470 = vrot.slane %v428, 7
        %v471 = vrot.slane %v429, 7
        %v472 = vsel %vm460, %v470, %v471
        %v473 = vrot.slane %v430, 7
        %v474 = vrot.slane %v431, 7
        %v475 = vsel %vm460, %v473, %v474
        %v476 = vrot.slane %v432, 7
        %v477 = vrot.slane %v433, 7
        %v478 = vsel %vm460, %v476, %v477
        %v479 = vrot.slane %v434, 7
        %v480 = vrot.slane %v435, 7
        %v481 = vsel %vm460, %v479, %v480
        %v482 = vrot.slane %v436, 7
        %v483 = vrot.slane %v437, 7
        %v484 = vsel %vm460, %v482, %v483
        %v485 = vrot.slane %v438, 7
        %v486 = vrot.slane %v439, 7
        %v487 = vsel %vm460, %v485, %v486
        %v488 = vrot.slane %v422, 7
        %v489 = vrot.slane %v423, 7
        %v490 = vsel %vm460, %v488, %v489
        %v521 = vsel %vm460, 0.0, %v461
        %v522 = vsel %vm460, 0.0, %v464
        %v523 = vsel %vm460, 0.0, %v467
        %v524 = vsel %vm460, 0.0, %v470
        %v525 = vsel %vm460, 0.0, %v473
        %v526 = vsel %vm460, 0.0, %v476
        %v527 = vsel %vm460, 0.0, %v479
        %v528 = vsel %vm460, 0.0, %v482
        %v529 = vsel %vm460, 0.0, %v485
        %v530 = vsel %vm460, 0.0, %v488
        %v531 = vsel %vm460, %v462, 0.0
        %v532 = vsel %vm460, %v465, 0.0
        %v533 = vsel %vm460, %v468, 0.0
        %v534 = vsel %vm460, %v471, 0.0
        %v535 = vsel %vm460, %v474, 0.0
        %v536 = vsel %vm460, %v477, 0.0
        %v537 = vsel %vm460, %v480, 0.0
        %v538 = vsel %vm460, %v483, 0.0
        %v539 = vsel %vm460, %v486, 0.0
        %v540 = vsel %vm460, %v489, 0.0
        %v541 = vld [vmem:[%s3] sm:$0xff]
        %s542 = scalar_lea.vmem %s3, 24
        %v543 = vld [vmem:[%s542] sm:$0xff]
        %vm544 = vcmask 64512
        %v546 = vsel %vm544, %v522, 0
        %v548 = vsel %vm544, %v466, 0
        %v551 = vsel %vm544, %v532, 0
        %v554 = vsel %vm544, %v523, 0
        %v556 = vsel %vm544, %v469, 0
        %v559 = vsel %vm544, %v533, 0
        %v562 = vsel %vm544, %v524, 0
        %v564 = vsel %vm544, %v472, 0
        %v567 = vsel %vm544, %v534, 0
        %v570 = vsel %vm544, %v525, 0
        %v572 = vsel %vm544, %v475, 0
        %v575 = vsel %vm544, %v535, 0
        %v578 = vsel %vm544, %v526, 0
        %v580 = vsel %vm544, %v478, 0
        %v583 = vsel %vm544, %v536, 0
        %v586 = vsel %vm544, %v527, 0
        %v588 = vsel %vm544, %v481, 0
        %v591 = vsel %vm544, %v537, 0
        %v594 = vsel %vm544, %v528, 0
        %v596 = vsel %vm544, %v484, 0
        %v599 = vsel %vm544, %v538, 0
        %v602 = vsel %vm544, %v529, 0
        %v604 = vsel %vm544, %v487, 0
        %v607 = vsel %vm544, %v539, 0
        %609 = vmatpush.msra.mxu0 0.0
        %610 = vmatpush.msra.mxu0 0.0
        %611 = vmatpush.msra.mxu0 0.0
        %612 = vmatpush.msra.mxu0 0.0
        %613 = vmatpush.msra.mxu0 0.0
        %614 = vmatpush.msra.mxu0 0.0
        %615 = vmatpush.msra.mxu0 0.0
        %616 = vmatpush.msra.mxu0 0.0
        %617 = vmatpush.msra.mxu0 0.0
        %618 = vmatpush.msra.mxu0 0.0
        %619 = vmatpush.msra.mxu0 0.0
        %620 = vmatpush.msra.mxu0 0.0
        %621 = vmatpush.msra.mxu0 0.0
        %622 = vmatpush.msra.mxu0 0.0
        %623 = vmatpush.msra.mxu0 0.0
        %624 = vmatpush.msra.mxu0 %v543
        %625 = vmatmul.f32.gmra.mxu0 %v546
        %v626 = vpop.f32.mrf.mxu0
        %v627 = vadd.f32 0.0, %v626
        %628 = vmatmul.f32.gmra.mxu0 %v548
        %v629 = vpop.f32.mrf.mxu0
        %v630 = vadd.f32 0.0, %v629
        %631 = vmatmul.f32.gmra.mxu0 %v551
        %v632 = vpop.f32.mrf.mxu0
        %633 = vmatmul.f32.gmra.mxu0 %v554
        %v634 = vpop.f32.mrf.mxu0
        %v635 = vadd.f32 0.0, %v634
        %636 = vmatmul.f32.gmra.mxu0 %v556
        %v637 = vpop.f32.mrf.mxu0
        %v638 = vadd.f32 0.0, %v637
        %639 = vmatmul.f32.gmra.mxu0 %v559
        %v640 = vpop.f32.mrf.mxu0
        %641 = vmatmul.f32.gmra.mxu0 %v562
        %v642 = vpop.f32.mrf.mxu0
        %v643 = vadd.f32 0.0, %v642
        %644 = vmatmul.f32.gmra.mxu0 %v564
        %v645 = vpop.f32.mrf.mxu0
        %v646 = vadd.f32 0.0, %v645
        %647 = vmatmul.f32.gmra.mxu0 %v567
        %v648 = vpop.f32.mrf.mxu0
        %649 = vmatmul.f32.gmra.mxu0 %v570
        %v650 = vpop.f32.mrf.mxu0
        %v651 = vadd.f32 0.0, %v650
        %652 = vmatmul.f32.gmra.mxu0 %v572
        %v653 = vpop.f32.mrf.mxu0
        %v654 = vadd.f32 0.0, %v653
        %655 = vmatmul.f32.gmra.mxu0 %v575
        %v656 = vpop.f32.mrf.mxu0
        %657 = vmatmul.f32.gmra.mxu0 %v578
        %v658 = vpop.f32.mrf.mxu0
        %v659 = vadd.f32 0.0, %v658
        %660 = vmatmul.f32.gmra.mxu0 %v580
        %v661 = vpop.f32.mrf.mxu0
        %v662 = vadd.f32 0.0, %v661
        %663 = vmatmul.f32.gmra.mxu0 %v583
        %v664 = vpop.f32.mrf.mxu0
        %665 = vmatmul.f32.gmra.mxu0 %v586
        %v666 = vpop.f32.mrf.mxu0
        %v667 = vadd.f32 0.0, %v666
        %668 = vmatmul.f32.gmra.mxu0 %v588
        %v669 = vpop.f32.mrf.mxu0
        %v670 = vadd.f32 0.0, %v669
        %671 = vmatmul.f32.gmra.mxu0 %v591
        %v672 = vpop.f32.mrf.mxu0
        %673 = vmatmul.f32.gmra.mxu0 %v594
        %v674 = vpop.f32.mrf.mxu0
        %v675 = vadd.f32 0.0, %v674
        %676 = vmatmul.f32.gmra.mxu0 %v596
        %v677 = vpop.f32.mrf.mxu0
        %v678 = vadd.f32 0.0, %v677
        %679 = vmatmul.f32.gmra.mxu0 %v599
        %v680 = vpop.f32.mrf.mxu0
        %681 = vmatmul.f32.gmra.mxu0 %v602
        %v682 = vpop.f32.mrf.mxu0
        %v683 = vadd.f32 0.0, %v682
        %684 = vmatmul.f32.gmra.mxu0 %v604
        %v685 = vpop.f32.mrf.mxu0
        %v686 = vadd.f32 0.0, %v685
        %687 = vmatmul.f32.gmra.mxu0 %v607
        %v688 = vpop.f32.mrf.mxu0
        %689 = vdwg.mxu0
        %v691 = vsel %vm544, %v521, 0
        %v693 = vsel %vm544, %v463, 0
        %v696 = vsel %vm544, %v531, 0
        %698 = vmatpush.msra.mxu0 0.0
        %699 = vmatpush.msra.mxu0 0.0
        %700 = vmatpush.msra.mxu0 0.0
        %701 = vmatpush.msra.mxu0 0.0
        %702 = vmatpush.msra.mxu0 0.0
        %703 = vmatpush.msra.mxu0 0.0
        %704 = vmatpush.msra.mxu0 0.0
        %705 = vmatpush.msra.mxu0 0.0
        %706 = vmatpush.msra.mxu0 0.0
        %707 = vmatpush.msra.mxu0 0.0
        %708 = vmatpush.msra.mxu0 0.0
        %709 = vmatpush.msra.mxu0 0.0
        %710 = vmatpush.msra.mxu0 0.0
        %711 = vmatpush.msra.mxu0 0.0
        %712 = vmatpush.msra.mxu0 0.0
        %713 = vmatpush.msra.mxu0 %v541
        %714 = vmatmul.f32.gmra.mxu0 %v691
        %v715 = vpop.f32.mrf.mxu0
        %v716 = vadd.f32 %v627, %v715
        %717 = vmatmul.f32.gmra.mxu0 %v693
        %v718 = vpop.f32.mrf.mxu0
        %v719 = vadd.f32 %v630, %v718
        %720 = vmatmul.f32.gmra.mxu0 %v696
        %v721 = vpop.f32.mrf.mxu0
        %722 = vmatmul.f32.gmra.mxu0 %v546
        %v723 = vpop.f32.mrf.mxu0
        %v724 = vadd.f32 %v635, %v723
        %725 = vmatmul.f32.gmra.mxu0 %v548
        %v726 = vpop.f32.mrf.mxu0
        %v727 = vadd.f32 %v638, %v726
        %728 = vmatmul.f32.gmra.mxu0 %v551
        %v729 = vpop.f32.mrf.mxu0
        %730 = vmatmul.f32.gmra.mxu0 %v554
        %v731 = vpop.f32.mrf.mxu0
        %v732 = vadd.f32 %v643, %v731
        %733 = vmatmul.f32.gmra.mxu0 %v556
        %v734 = vpop.f32.mrf.mxu0
        %v735 = vadd.f32 %v646, %v734
        %736 = vmatmul.f32.gmra.mxu0 %v559
        %v737 = vpop.f32.mrf.mxu0
        %738 = vmatmul.f32.gmra.mxu0 %v562
        %v739 = vpop.f32.mrf.mxu0
        %v740 = vadd.f32 %v651, %v739
        %741 = vmatmul.f32.gmra.mxu0 %v564
        %v742 = vpop.f32.mrf.mxu0
        %v743 = vadd.f32 %v654, %v742
        %744 = vmatmul.f32.gmra.mxu0 %v567
        %v745 = vpop.f32.mrf.mxu0
        %746 = vmatmul.f32.gmra.mxu0 %v570
        %v747 = vpop.f32.mrf.mxu0
        %v748 = vadd.f32 %v659, %v747
        %749 = vmatmul.f32.gmra.mxu0 %v572
        %v750 = vpop.f32.mrf.mxu0
        %v751 = vadd.f32 %v662, %v750
        %752 = vmatmul.f32.gmra.mxu0 %v575
        %v753 = vpop.f32.mrf.mxu0
        %754 = vmatmul.f32.gmra.mxu0 %v578
        %v755 = vpop.f32.mrf.mxu0
        %v756 = vadd.f32 %v667, %v755
        %757 = vmatmul.f32.gmra.mxu0 %v580
        %v758 = vpop.f32.mrf.mxu0
        %v759 = vadd.f32 %v670, %v758
        %760 = vmatmul.f32.gmra.mxu0 %v583
        %v761 = vpop.f32.mrf.mxu0
        %762 = vmatmul.f32.gmra.mxu0 %v586
        %v763 = vpop.f32.mrf.mxu0
        %v764 = vadd.f32 %v675, %v763
        %765 = vmatmul.f32.gmra.mxu0 %v588
        %v766 = vpop.f32.mrf.mxu0
        %v767 = vadd.f32 %v678, %v766
        %768 = vmatmul.f32.gmra.mxu0 %v591
        %v769 = vpop.f32.mrf.mxu0
        %770 = vmatmul.f32.gmra.mxu0 %v594
        %v771 = vpop.f32.mrf.mxu0
        %v772 = vadd.f32 %v683, %v771
        %773 = vmatmul.f32.gmra.mxu0 %v596
        %v774 = vpop.f32.mrf.mxu0
        %v775 = vadd.f32 %v686, %v774
        %776 = vmatmul.f32.gmra.mxu0 %v599
        %v777 = vpop.f32.mrf.mxu0
        %778 = vdwg.mxu0
        %s779 = scalar_lea.vmem %s3, 48
        %v780 = vld [vmem:[%s779] sm:$0xff]
        %v782 = vsel %vm544, %v530, 0
        %v784 = vsel %vm544, %v490, 0
        %v787 = vsel %vm544, %v540, 0
        %789 = vmatpush.msra.mxu0 0.0
        %790 = vmatpush.msra.mxu0 0.0
        %791 = vmatpush.msra.mxu0 0.0
        %792 = vmatpush.msra.mxu0 0.0
        %793 = vmatpush.msra.mxu0 0.0
        %794 = vmatpush.msra.mxu0 0.0
        %795 = vmatpush.msra.mxu0 0.0
        %796 = vmatpush.msra.mxu0 0.0
        %797 = vmatpush.msra.mxu0 0.0
        %798 = vmatpush.msra.mxu0 0.0
        %799 = vmatpush.msra.mxu0 0.0
        %800 = vmatpush.msra.mxu0 0.0
        %801 = vmatpush.msra.mxu0 0.0
        %802 = vmatpush.msra.mxu0 0.0
        %803 = vmatpush.msra.mxu0 0.0
        %804 = vmatpush.msra.mxu0 %v780
        %805 = vmatmul.f32.gmra.mxu0 %v554
        %v806 = vpop.f32.mrf.mxu0
        %v807 = vadd.f32 0.0, %v806
        %808 = vmatmul.f32.gmra.mxu0 %v556
        %v809 = vpop.f32.mrf.mxu0
        %v810 = vadd.f32 0.0, %v809
        %811 = vmatmul.f32.gmra.mxu0 %v559
        %v812 = vpop.f32.mrf.mxu0
        %813 = vmatmul.f32.gmra.mxu0 %v562
        %v814 = vpop.f32.mrf.mxu0
        %v815 = vadd.f32 0.0, %v814
        %816 = vmatmul.f32.gmra.mxu0 %v564
        %v817 = vpop.f32.mrf.mxu0
        %v818 = vadd.f32 0.0, %v817
        %819 = vmatmul.f32.gmra.mxu0 %v567
        %v820 = vpop.f32.mrf.mxu0
        %821 = vmatmul.f32.gmra.mxu0 %v570
        %v822 = vpop.f32.mrf.mxu0
        %v823 = vadd.f32 0.0, %v822
        %824 = vmatmul.f32.gmra.mxu0 %v572
        %v825 = vpop.f32.mrf.mxu0
        %v826 = vadd.f32 0.0, %v825
        %827 = vmatmul.f32.gmra.mxu0 %v575
        %v828 = vpop.f32.mrf.mxu0
        %829 = vmatmul.f32.gmra.mxu0 %v578
        %v830 = vpop.f32.mrf.mxu0
        %v831 = vadd.f32 0.0, %v830
        %832 = vmatmul.f32.gmra.mxu0 %v580
        %v833 = vpop.f32.mrf.mxu0
        %v834 = vadd.f32 0.0, %v833
        %835 = vmatmul.f32.gmra.mxu0 %v583
        %v836 = vpop.f32.mrf.mxu0
        %837 = vmatmul.f32.gmra.mxu0 %v586
        %v838 = vpop.f32.mrf.mxu0
        %v839 = vadd.f32 0.0, %v838
        %840 = vmatmul.f32.gmra.mxu0 %v588
        %v841 = vpop.f32.mrf.mxu0
        %v842 = vadd.f32 0.0, %v841
        %843 = vmatmul.f32.gmra.mxu0 %v591
        %v844 = vpop.f32.mrf.mxu0
        %845 = vmatmul.f32.gmra.mxu0 %v594
        %v846 = vpop.f32.mrf.mxu0
        %v847 = vadd.f32 0.0, %v846
        %848 = vmatmul.f32.gmra.mxu0 %v596
        %v849 = vpop.f32.mrf.mxu0
        %v850 = vadd.f32 0.0, %v849
        %851 = vmatmul.f32.gmra.mxu0 %v599
        %v852 = vpop.f32.mrf.mxu0
        %853 = vmatmul.f32.gmra.mxu0 %v602
        %v854 = vpop.f32.mrf.mxu0
        %v855 = vadd.f32 0.0, %v854
        %856 = vmatmul.f32.gmra.mxu0 %v604
        %v857 = vpop.f32.mrf.mxu0
        %v858 = vadd.f32 0.0, %v857
        %859 = vmatmul.f32.gmra.mxu0 %v607
        %v860 = vpop.f32.mrf.mxu0
        %861 = vmatmul.f32.gmra.mxu0 %v782
        %v862 = vpop.f32.mrf.mxu0
        %v863 = vadd.f32 0.0, %v862
        %864 = vmatmul.f32.gmra.mxu0 %v784
        %v865 = vpop.f32.mrf.mxu0
        %v866 = vadd.f32 0.0, %v865
        %867 = vmatmul.f32.gmra.mxu0 %v787
        %v868 = vpop.f32.mrf.mxu0
        %869 = vdwg.mxu0
        %v870 = vadd.f32 %v716, %v807
        %v871 = vadd.f32 %v719, %v810
        %v872 = vadd.f32 %v724, %v815
        %v873 = vadd.f32 %v727, %v818
        %v874 = vadd.f32 %v732, %v823
        %v875 = vadd.f32 %v735, %v826
        %v876 = vadd.f32 %v740, %v831
        %v877 = vadd.f32 %v743, %v834
        %v878 = vadd.f32 %v748, %v839
        %v879 = vadd.f32 %v751, %v842
        %v880 = vadd.f32 %v756, %v847
        %v881 = vadd.f32 %v759, %v850
        %v882 = vadd.f32 %v764, %v855
        %v883 = vadd.f32 %v767, %v858
        %v884 = vadd.f32 %v772, %v863
        %v885 = vadd.f32 %v775, %v866
        %v886 = vrot.slane %v521, 1
        %v887 = vrot.slane %v463, 1
        %v888 = vrot.slane %v531, 1
        %v889 = vrot.slane %v522, 1
        %v890 = vrot.slane %v466, 1
        %v891 = vrot.slane %v532, 1
        %v892 = vrot.slane %v523, 1
        %v893 = vrot.slane %v469, 1
        %v894 = vrot.slane %v533, 1
        %v895 = vrot.slane %v524, 1
        %v896 = vrot.slane %v472, 1
        %v897 = vrot.slane %v534, 1
        %v898 = vrot.slane %v525, 1
        %v899 = vrot.slane %v475, 1
        %v900 = vrot.slane %v535, 1
        %v901 = vrot.slane %v526, 1
        %v902 = vrot.slane %v478, 1
        %v903 = vrot.slane %v536, 1
        %v904 = vrot.slane %v527, 1
        %v905 = vrot.slane %v481, 1
        %v906 = vrot.slane %v537, 1
        %v907 = vrot.slane %v528, 1
        %v908 = vrot.slane %v484, 1
        %v909 = vrot.slane %v538, 1
        %v910 = vrot.slane %v529, 1
        %v911 = vrot.slane %v487, 1
        %v912 = vrot.slane %v539, 1
        %v913 = vrot.slane %v530, 1
        %v914 = vrot.slane %v490, 1
        %v915 = vrot.slane %v540, 1
        %v916 = vlaneseq
        %v917 = vshrl.u32 %v916, 7
        %vm918 = vcmp.lt.s32.totalorder %v917, 7
        %v919 = vsel %vm918, %v914, %v915
        %v920 = vsel %vm918, %v913, %v914
        %v921 = vsel %vm918, %v912, %v913
        %v922 = vsel %vm918, %v911, %v912
        %v923 = vsel %vm918, %v910, %v911
        %v924 = vsel %vm918, %v909, %v910
        %v925 = vsel %vm918, %v908, %v909
        %v926 = vsel %vm918, %v907, %v908
        %v927 = vsel %vm918, %v906, %v907
        %v928 = vsel %vm918, %v905, %v906
        %v929 = vsel %vm918, %v904, %v905
        %v930 = vsel %vm918, %v903, %v904
        %v931 = vsel %vm918, %v902, %v903
        %v932 = vsel %vm918, %v901, %v902
        %v933 = vsel %vm918, %v900, %v901
        %v934 = vsel %vm918, %v899, %v900
        %v935 = vsel %vm918, %v898, %v899
        %v936 = vsel %vm918, %v897, %v898
        %v937 = vsel %vm918, %v896, %v897
        %v938 = vsel %vm918, %v895, %v896
        %v939 = vsel %vm918, %v894, %v895
        %v940 = vsel %vm918, %v893, %v894
        %v941 = vsel %vm918, %v892, %v893
        %v942 = vsel %vm918, %v891, %v892
        %v943 = vsel %vm918, %v890, %v891
        %v944 = vsel %vm918, %v889, %v890
        %v945 = vsel %vm918, %v888, %v889
        %v946 = vsel %vm918, %v887, %v888
        %v947 = vsel %vm918, %v886, %v887
        %v948 = vsel %vm918, %v915, %v886
        %s949 = scalar_lea.vmem %s3, 8
        %v950 = vld [vmem:[%s949] sm:$0xff]
        %s951 = scalar_lea.vmem %s3, 32
        %v952 = vld [vmem:[%s951] sm:$0xff]
        %v954 = vsel %vm544, %v944, 0
        %v957 = vsel %vm544, %v943, 0
        %v960 = vsel %vm544, %v942, 0
        %v963 = vsel %vm544, %v941, 0
        %v966 = vsel %vm544, %v940, 0
        %v969 = vsel %vm544, %v939, 0
        %v972 = vsel %vm544, %v938, 0
        %v975 = vsel %vm544, %v937, 0
        %v978 = vsel %vm544, %v936, 0
        %v981 = vsel %vm544, %v935, 0
        %v984 = vsel %vm544, %v934, 0
        %v987 = vsel %vm544, %v933, 0
        %v990 = vsel %vm544, %v932, 0
        %v993 = vsel %vm544, %v931, 0
        %v996 = vsel %vm544, %v930, 0
        %v999 = vsel %vm544, %v929, 0
        %v1002 = vsel %vm544, %v928, 0
        %v1005 = vsel %vm544, %v927, 0
        %v1008 = vsel %vm544, %v926, 0
        %v1011 = vsel %vm544, %v925, 0
        %v1014 = vsel %vm544, %v924, 0
        %v1017 = vsel %vm544, %v923, 0
        %v1020 = vsel %vm544, %v922, 0
        %v1023 = vsel %vm544, %v921, 0
        %1025 = vmatpush.msra.mxu0 0.0
        %1026 = vmatpush.msra.mxu0 0.0
        %1027 = vmatpush.msra.mxu0 0.0
        %1028 = vmatpush.msra.mxu0 0.0
        %1029 = vmatpush.msra.mxu0 0.0
        %1030 = vmatpush.msra.mxu0 0.0
        %1031 = vmatpush.msra.mxu0 0.0
        %1032 = vmatpush.msra.mxu0 0.0
        %1033 = vmatpush.msra.mxu0 0.0
        %1034 = vmatpush.msra.mxu0 0.0
        %1035 = vmatpush.msra.mxu0 0.0
        %1036 = vmatpush.msra.mxu0 0.0
        %1037 = vmatpush.msra.mxu0 0.0
        %1038 = vmatpush.msra.mxu0 0.0
        %1039 = vmatpush.msra.mxu0 0.0
        %1040 = vmatpush.msra.mxu0 %v952
        %1041 = vmatmul.f32.gmra.mxu0 %v954
        %v1042 = vpop.f32.mrf.mxu0
        %v1043 = vadd.f32 0.0, %v1042
        %1044 = vmatmul.f32.gmra.mxu0 %v957
        %v1045 = vpop.f32.mrf.mxu0
        %v1046 = vadd.f32 0.0, %v1045
        %1047 = vmatmul.f32.gmra.mxu0 %v960
        %v1048 = vpop.f32.mrf.mxu0
        %1049 = vmatmul.f32.gmra.mxu0 %v963
        %v1050 = vpop.f32.mrf.mxu0
        %v1051 = vadd.f32 0.0, %v1050
        %1052 = vmatmul.f32.gmra.mxu0 %v966
        %v1053 = vpop.f32.mrf.mxu0
        %v1054 = vadd.f32 0.0, %v1053
        %1055 = vmatmul.f32.gmra.mxu0 %v969
        %v1056 = vpop.f32.mrf.mxu0
        %1057 = vmatmul.f32.gmra.mxu0 %v972
        %v1058 = vpop.f32.mrf.mxu0
        %v1059 = vadd.f32 0.0, %v1058
        %1060 = vmatmul.f32.gmra.mxu0 %v975
        %v1061 = vpop.f32.mrf.mxu0
        %v1062 = vadd.f32 0.0, %v1061
        %1063 = vmatmul.f32.gmra.mxu0 %v978
        %v1064 = vpop.f32.mrf.mxu0
        %1065 = vmatmul.f32.gmra.mxu0 %v981
        %v1066 = vpop.f32.mrf.mxu0
        %v1067 = vadd.f32 0.0, %v1066
        %1068 = vmatmul.f32.gmra.mxu0 %v984
        %v1069 = vpop.f32.mrf.mxu0
        %v1070 = vadd.f32 0.0, %v1069
        %1071 = vmatmul.f32.gmra.mxu0 %v987
        %v1072 = vpop.f32.mrf.mxu0
        %1073 = vmatmul.f32.gmra.mxu0 %v990
        %v1074 = vpop.f32.mrf.mxu0
        %v1075 = vadd.f32 0.0, %v1074
        %1076 = vmatmul.f32.gmra.mxu0 %v993
        %v1077 = vpop.f32.mrf.mxu0
        %v1078 = vadd.f32 0.0, %v1077
        %1079 = vmatmul.f32.gmra.mxu0 %v996
        %v1080 = vpop.f32.mrf.mxu0
        %1081 = vmatmul.f32.gmra.mxu0 %v999
        %v1082 = vpop.f32.mrf.mxu0
        %v1083 = vadd.f32 0.0, %v1082
        %1084 = vmatmul.f32.gmra.mxu0 %v1002
        %v1085 = vpop.f32.mrf.mxu0
        %v1086 = vadd.f32 0.0, %v1085
        %1087 = vmatmul.f32.gmra.mxu0 %v1005
        %v1088 = vpop.f32.mrf.mxu0
        %1089 = vmatmul.f32.gmra.mxu0 %v1008
        %v1090 = vpop.f32.mrf.mxu0
        %v1091 = vadd.f32 0.0, %v1090
        %1092 = vmatmul.f32.gmra.mxu0 %v1011
        %v1093 = vpop.f32.mrf.mxu0
        %v1094 = vadd.f32 0.0, %v1093
        %1095 = vmatmul.f32.gmra.mxu0 %v1014
        %v1096 = vpop.f32.mrf.mxu0
        %1097 = vmatmul.f32.gmra.mxu0 %v1017
        %v1098 = vpop.f32.mrf.mxu0
        %v1099 = vadd.f32 0.0, %v1098
        %1100 = vmatmul.f32.gmra.mxu0 %v1020
        %v1101 = vpop.f32.mrf.mxu0
        %v1102 = vadd.f32 0.0, %v1101
        %1103 = vmatmul.f32.gmra.mxu0 %v1023
        %v1104 = vpop.f32.mrf.mxu0
        %1105 = vdwg.mxu0
        %v1107 = vsel %vm544, %v947, 0
        %v1110 = vsel %vm544, %v946, 0
        %v1113 = vsel %vm544, %v945, 0
        %1115 = vmatpush.msra.mxu0 0.0
        %1116 = vmatpush.msra.mxu0 0.0
        %1117 = vmatpush.msra.mxu0 0.0
        %1118 = vmatpush.msra.mxu0 0.0
        %1119 = vmatpush.msra.mxu0 0.0
        %1120 = vmatpush.msra.mxu0 0.0
        %1121 = vmatpush.msra.mxu0 0.0
        %1122 = vmatpush.msra.mxu0 0.0
        %1123 = vmatpush.msra.mxu0 0.0
        %1124 = vmatpush.msra.mxu0 0.0
        %1125 = vmatpush.msra.mxu0 0.0
        %1126 = vmatpush.msra.mxu0 0.0
        %1127 = vmatpush.msra.mxu0 0.0
        %1128 = vmatpush.msra.mxu0 0.0
        %1129 = vmatpush.msra.mxu0 0.0
        %1130 = vmatpush.msra.mxu0 %v950
        %1131 = vmatmul.f32.gmra.mxu0 %v1107
        %v1132 = vpop.f32.mrf.mxu0
        %v1133 = vadd.f32 %v1043, %v1132
        %1134 = vmatmul.f32.gmra.mxu0 %v1110
        %v1135 = vpop.f32.mrf.mxu0
        %v1136 = vadd.f32 %v1046, %v1135
        %1137 = vmatmul.f32.gmra.mxu0 %v1113
        %v1138 = vpop.f32.mrf.mxu0
        %1139 = vmatmul.f32.gmra.mxu0 %v954
        %v1140 = vpop.f32.mrf.mxu0
        %v1141 = vadd.f32 %v1051, %v1140
        %1142 = vmatmul.f32.gmra.mxu0 %v957
        %v1143 = vpop.f32.mrf.mxu0
        %v1144 = vadd.f32 %v1054, %v1143
        %1145 = vmatmul.f32.gmra.mxu0 %v960
        %v1146 = vpop.f32.mrf.mxu0
        %1147 = vmatmul.f32.gmra.mxu0 %v963
        %v1148 = vpop.f32.mrf.mxu0
        %v1149 = vadd.f32 %v1059, %v1148
        %1150 = vmatmul.f32.gmra.mxu0 %v966
        %v1151 = vpop.f32.mrf.mxu0
        %v1152 = vadd.f32 %v1062, %v1151
        %1153 = vmatmul.f32.gmra.mxu0 %v969
        %v1154 = vpop.f32.mrf.mxu0
        %1155 = vmatmul.f32.gmra.mxu0 %v972
        %v1156 = vpop.f32.mrf.mxu0
        %v1157 = vadd.f32 %v1067, %v1156
        %1158 = vmatmul.f32.gmra.mxu0 %v975
        %v1159 = vpop.f32.mrf.mxu0
        %v1160 = vadd.f32 %v1070, %v1159
        %1161 = vmatmul.f32.gmra.mxu0 %v978
        %v1162 = vpop.f32.mrf.mxu0
        %1163 = vmatmul.f32.gmra.mxu0 %v981
        %v1164 = vpop.f32.mrf.mxu0
        %v1165 = vadd.f32 %v1075, %v1164
        %1166 = vmatmul.f32.gmra.mxu0 %v984
        %v1167 = vpop.f32.mrf.mxu0
        %v1168 = vadd.f32 %v1078, %v1167
        %1169 = vmatmul.f32.gmra.mxu0 %v987
        %v1170 = vpop.f32.mrf.mxu0
        %1171 = vmatmul.f32.gmra.mxu0 %v990
        %v1172 = vpop.f32.mrf.mxu0
        %v1173 = vadd.f32 %v1083, %v1172
        %1174 = vmatmul.f32.gmra.mxu0 %v993
        %v1175 = vpop.f32.mrf.mxu0
        %v1176 = vadd.f32 %v1086, %v1175
        %1177 = vmatmul.f32.gmra.mxu0 %v996
        %v1178 = vpop.f32.mrf.mxu0
        %1179 = vmatmul.f32.gmra.mxu0 %v999
        %v1180 = vpop.f32.mrf.mxu0
        %v1181 = vadd.f32 %v1091, %v1180
        %1182 = vmatmul.f32.gmra.mxu0 %v1002
        %v1183 = vpop.f32.mrf.mxu0
        %v1184 = vadd.f32 %v1094, %v1183
        %1185 = vmatmul.f32.gmra.mxu0 %v1005
        %v1186 = vpop.f32.mrf.mxu0
        %1187 = vmatmul.f32.gmra.mxu0 %v1008
        %v1188 = vpop.f32.mrf.mxu0
        %v1189 = vadd.f32 %v1099, %v1188
        %1190 = vmatmul.f32.gmra.mxu0 %v1011
        %v1191 = vpop.f32.mrf.mxu0
        %v1192 = vadd.f32 %v1102, %v1191
        %1193 = vmatmul.f32.gmra.mxu0 %v1014
        %v1194 = vpop.f32.mrf.mxu0
        %1195 = vdwg.mxu0
        %s1196 = scalar_lea.vmem %s3, 56
        %v1197 = vld [vmem:[%s1196] sm:$0xff]
        %v1199 = vsel %vm544, %v920, 0
        %v1202 = vsel %vm544, %v919, 0
        %v1205 = vsel %vm544, %v948, 0
        %1207 = vmatpush.msra.mxu0 0.0
        %1208 = vmatpush.msra.mxu0 0.0
        %1209 = vmatpush.msra.mxu0 0.0
        %1210 = vmatpush.msra.mxu0 0.0
        %1211 = vmatpush.msra.mxu0 0.0
        %1212 = vmatpush.msra.mxu0 0.0
        %1213 = vmatpush.msra.mxu0 0.0
        %1214 = vmatpush.msra.mxu0 0.0
        %1215 = vmatpush.msra.mxu0 0.0
        %1216 = vmatpush.msra.mxu0 0.0
        %1217 = vmatpush.msra.mxu0 0.0
        %1218 = vmatpush.msra.mxu0 0.0
        %1219 = vmatpush.msra.mxu0 0.0
        %1220 = vmatpush.msra.mxu0 0.0
        %1221 = vmatpush.msra.mxu0 0.0
        %1222 = vmatpush.msra.mxu0 %v1197
        %1223 = vmatmul.f32.gmra.mxu0 %v963
        %v1224 = vpop.f32.mrf.mxu0
        %v1225 = vadd.f32 0.0, %v1224
        %1226 = vmatmul.f32.gmra.mxu0 %v966
        %v1227 = vpop.f32.mrf.mxu0
        %v1228 = vadd.f32 0.0, %v1227
        %1229 = vmatmul.f32.gmra.mxu0 %v969
        %v1230 = vpop.f32.mrf.mxu0
        %1231 = vmatmul.f32.gmra.mxu0 %v972
        %v1232 = vpop.f32.mrf.mxu0
        %v1233 = vadd.f32 0.0, %v1232
        %1234 = vmatmul.f32.gmra.mxu0 %v975
        %v1235 = vpop.f32.mrf.mxu0
        %v1236 = vadd.f32 0.0, %v1235
        %1237 = vmatmul.f32.gmra.mxu0 %v978
        %v1238 = vpop.f32.mrf.mxu0
        %1239 = vmatmul.f32.gmra.mxu0 %v981
        %v1240 = vpop.f32.mrf.mxu0
        %v1241 = vadd.f32 0.0, %v1240
        %1242 = vmatmul.f32.gmra.mxu0 %v984
        %v1243 = vpop.f32.mrf.mxu0
        %v1244 = vadd.f32 0.0, %v1243
        %1245 = vmatmul.f32.gmra.mxu0 %v987
        %v1246 = vpop.f32.mrf.mxu0
        %1247 = vmatmul.f32.gmra.mxu0 %v990
        %v1248 = vpop.f32.mrf.mxu0
        %v1249 = vadd.f32 0.0, %v1248
        %1250 = vmatmul.f32.gmra.mxu0 %v993
        %v1251 = vpop.f32.mrf.mxu0
        %v1252 = vadd.f32 0.0, %v1251
        %1253 = vmatmul.f32.gmra.mxu0 %v996
        %v1254 = vpop.f32.mrf.mxu0
        %1255 = vmatmul.f32.gmra.mxu0 %v999
        %v1256 = vpop.f32.mrf.mxu0
        %v1257 = vadd.f32 0.0, %v1256
        %1258 = vmatmul.f32.gmra.mxu0 %v1002
        %v1259 = vpop.f32.mrf.mxu0
        %v1260 = vadd.f32 0.0, %v1259
        %1261 = vmatmul.f32.gmra.mxu0 %v1005
        %v1262 = vpop.f32.mrf.mxu0
        %1263 = vmatmul.f32.gmra.mxu0 %v1008
        %v1264 = vpop.f32.mrf.mxu0
        %v1265 = vadd.f32 0.0, %v1264
        %1266 = vmatmul.f32.gmra.mxu0 %v1011
        %v1267 = vpop.f32.mrf.mxu0
        %v1268 = vadd.f32 0.0, %v1267
        %1269 = vmatmul.f32.gmra.mxu0 %v1014
        %v1270 = vpop.f32.mrf.mxu0
        %1271 = vmatmul.f32.gmra.mxu0 %v1017
        %v1272 = vpop.f32.mrf.mxu0
        %v1273 = vadd.f32 0.0, %v1272
        %1274 = vmatmul.f32.gmra.mxu0 %v1020
        %v1275 = vpop.f32.mrf.mxu0
        %v1276 = vadd.f32 0.0, %v1275
        %1277 = vmatmul.f32.gmra.mxu0 %v1023
        %v1278 = vpop.f32.mrf.mxu0
        %1279 = vmatmul.f32.gmra.mxu0 %v1199
        %v1280 = vpop.f32.mrf.mxu0
        %v1281 = vadd.f32 0.0, %v1280
        %1282 = vmatmul.f32.gmra.mxu0 %v1202
        %v1283 = vpop.f32.mrf.mxu0
        %v1284 = vadd.f32 0.0, %v1283
        %1285 = vmatmul.f32.gmra.mxu0 %v1205
        %v1286 = vpop.f32.mrf.mxu0
        %1287 = vdwg.mxu0
        %v1288 = vadd.f32 %v1133, %v1225
        %v1289 = vadd.f32 %v1136, %v1228
        %v1290 = vadd.f32 %v1141, %v1233
        %v1291 = vadd.f32 %v1144, %v1236
        %v1292 = vadd.f32 %v1149, %v1241
        %v1293 = vadd.f32 %v1152, %v1244
        %v1294 = vadd.f32 %v1157, %v1249
        %v1295 = vadd.f32 %v1160, %v1252
        %v1296 = vadd.f32 %v1165, %v1257
        %v1297 = vadd.f32 %v1168, %v1260
        %v1298 = vadd.f32 %v1173, %v1265
        %v1299 = vadd.f32 %v1176, %v1268
        %v1300 = vadd.f32 %v1181, %v1273
        %v1301 = vadd.f32 %v1184, %v1276
        %v1302 = vadd.f32 %v1189, %v1281
        %v1303 = vadd.f32 %v1192, %v1284
        %v1304 = vadd.f32 %v870, %v1288
        %v1305 = vadd.f32 %v871, %v1289
        %v1306 = vadd.f32 %v872, %v1290
        %v1307 = vadd.f32 %v873, %v1291
        %v1308 = vadd.f32 %v874, %v1292
        %v1309 = vadd.f32 %v875, %v1293
        %v1310 = vadd.f32 %v876, %v1294
        %v1311 = vadd.f32 %v877, %v1295
        %v1312 = vadd.f32 %v878, %v1296
        %v1313 = vadd.f32 %v879, %v1297
        %v1314 = vadd.f32 %v880, %v1298
        %v1315 = vadd.f32 %v881, %v1299
        %v1316 = vadd.f32 %v882, %v1300
        %v1317 = vadd.f32 %v883, %v1301
        %v1318 = vadd.f32 %v884, %v1302
        %v1319 = vadd.f32 %v885, %v1303
        %v1320 = vrot.slane %v521, 2
        %v1321 = vrot.slane %v463, 2
        %v1322 = vrot.slane %v531, 2
        %v1323 = vrot.slane %v522, 2
        %v1324 = vrot.slane %v466, 2
        %v1325 = vrot.slane %v532, 2
        %v1326 = vrot.slane %v523, 2
        %v1327 = vrot.slane %v469, 2
        %v1328 = vrot.slane %v533, 2
        %v1329 = vrot.slane %v524, 2
        %v1330 = vrot.slane %v472, 2
        %v1331 = vrot.slane %v534, 2
        %v1332 = vrot.slane %v525, 2
        %v1333 = vrot.slane %v475, 2
        %v1334 = vrot.slane %v535, 2
        %v1335 = vrot.slane %v526, 2
        %v1336 = vrot.slane %v478, 2
        %v1337 = vrot.slane %v536, 2
        %v1338 = vrot.slane %v527, 2
        %v1339 = vrot.slane %v481, 2
        %v1340 = vrot.slane %v537, 2
        %v1341 = vrot.slane %v528, 2
        %v1342 = vrot.slane %v484, 2
        %v1343 = vrot.slane %v538, 2
        %v1344 = vrot.slane %v529, 2
        %v1345 = vrot.slane %v487, 2
        %v1346 = vrot.slane %v539, 2
        %v1347 = vrot.slane %v530, 2
        %v1348 = vrot.slane %v490, 2
        %v1349 = vrot.slane %v540, 2
        %vm1350 = vcmp.lt.s32.totalorder %v917, 6
        %v1351 = vsel %vm1350, %v1348, %v1349
        %v1352 = vsel %vm1350, %v1347, %v1348
        %v1353 = vsel %vm1350, %v1346, %v1347
        %v1354 = vsel %vm1350, %v1345, %v1346
        %v1355 = vsel %vm1350, %v1344, %v1345
        %v1356 = vsel %vm1350, %v1343, %v1344
        %v1357 = vsel %vm1350, %v1342, %v1343
        %v1358 = vsel %vm1350, %v1341, %v1342
        %v1359 = vsel %vm1350, %v1340, %v1341
        %v1360 = vsel %vm1350, %v1339, %v1340
        %v1361 = vsel %vm1350, %v1338, %v1339
        %v1362 = vsel %vm1350, %v1337, %v1338
        %v1363 = vsel %vm1350, %v1336, %v1337
        %v1364 = vsel %vm1350, %v1335, %v1336
        %v1365 = vsel %vm1350, %v1334, %v1335
        %v1366 = vsel %vm1350, %v1333, %v1334
        %v1367 = vsel %vm1350, %v1332, %v1333
        %v1368 = vsel %vm1350, %v1331, %v1332
        %v1369 = vsel %vm1350, %v1330, %v1331
        %v1370 = vsel %vm1350, %v1329, %v1330
        %v1371 = vsel %vm1350, %v1328, %v1329
        %v1372 = vsel %vm1350, %v1327, %v1328
        %v1373 = vsel %vm1350, %v1326, %v1327
        %v1374 = vsel %vm1350, %v1325, %v1326
        %v1375 = vsel %vm1350, %v1324, %v1325
        %v1376 = vsel %vm1350, %v1323, %v1324
        %v1377 = vsel %vm1350, %v1322, %v1323
        %v1378 = vsel %vm1350, %v1321, %v1322
        %v1379 = vsel %vm1350, %v1320, %v1321
        %v1380 = vsel %vm1350, %v1349, %v1320
        %s1381 = scalar_lea.vmem %s3, 16
        %v1382 = vld [vmem:[%s1381] sm:$0xff]
        %s1383 = scalar_lea.vmem %s3, 40
        %v1384 = vld [vmem:[%s1383] sm:$0xff]
        %v1386 = vsel %vm544, %v1376, 0
        %v1389 = vsel %vm544, %v1375, 0
        %v1392 = vsel %vm544, %v1374, 0
        %v1395 = vsel %vm544, %v1373, 0
        %v1398 = vsel %vm544, %v1372, 0
        %v1401 = vsel %vm544, %v1371, 0
        %v1404 = vsel %vm544, %v1370, 0
        %v1407 = vsel %vm544, %v1369, 0
        %v1410 = vsel %vm544, %v1368, 0
        %v1413 = vsel %vm544, %v1367, 0
        %v1416 = vsel %vm544, %v1366, 0
        %v1419 = vsel %vm544, %v1365, 0
        %v1422 = vsel %vm544, %v1364, 0
        %v1425 = vsel %vm544, %v1363, 0
        %v1428 = vsel %vm544, %v1362, 0
        %v1431 = vsel %vm544, %v1361, 0
        %v1434 = vsel %vm544, %v1360, 0
        %v1437 = vsel %vm544, %v1359, 0
        %v1440 = vsel %vm544, %v1358, 0
        %v1443 = vsel %vm544, %v1357, 0
        %v1446 = vsel %vm544, %v1356, 0
        %v1449 = vsel %vm544, %v1355, 0
        %v1452 = vsel %vm544, %v1354, 0
        %v1455 = vsel %vm544, %v1353, 0
        %1457 = vmatpush.msra.mxu0 0.0
        %1458 = vmatpush.msra.mxu0 0.0
        %1459 = vmatpush.msra.mxu0 0.0
        %1460 = vmatpush.msra.mxu0 0.0
        %1461 = vmatpush.msra.mxu0 0.0
        %1462 = vmatpush.msra.mxu0 0.0
        %1463 = vmatpush.msra.mxu0 0.0
        %1464 = vmatpush.msra.mxu0 0.0
        %1465 = vmatpush.msra.mxu0 0.0
        %1466 = vmatpush.msra.mxu0 0.0
        %1467 = vmatpush.msra.mxu0 0.0
        %1468 = vmatpush.msra.mxu0 0.0
        %1469 = vmatpush.msra.mxu0 0.0
        %1470 = vmatpush.msra.mxu0 0.0
        %1471 = vmatpush.msra.mxu0 0.0
        %1472 = vmatpush.msra.mxu0 %v1384
        %1473 = vmatmul.f32.gmra.mxu0 %v1386
        %v1474 = vpop.f32.mrf.mxu0
        %v1475 = vadd.f32 0.0, %v1474
        %1476 = vmatmul.f32.gmra.mxu0 %v1389
        %v1477 = vpop.f32.mrf.mxu0
        %v1478 = vadd.f32 0.0, %v1477
        %1479 = vmatmul.f32.gmra.mxu0 %v1392
        %v1480 = vpop.f32.mrf.mxu0
        %1481 = vmatmul.f32.gmra.mxu0 %v1395
        %v1482 = vpop.f32.mrf.mxu0
        %v1483 = vadd.f32 0.0, %v1482
        %1484 = vmatmul.f32.gmra.mxu0 %v1398
        %v1485 = vpop.f32.mrf.mxu0
        %v1486 = vadd.f32 0.0, %v1485
        %1487 = vmatmul.f32.gmra.mxu0 %v1401
        %v1488 = vpop.f32.mrf.mxu0
        %1489 = vmatmul.f32.gmra.mxu0 %v1404
        %v1490 = vpop.f32.mrf.mxu0
        %v1491 = vadd.f32 0.0, %v1490
        %1492 = vmatmul.f32.gmra.mxu0 %v1407
        %v1493 = vpop.f32.mrf.mxu0
        %v1494 = vadd.f32 0.0, %v1493
        %1495 = vmatmul.f32.gmra.mxu0 %v1410
        %v1496 = vpop.f32.mrf.mxu0
        %1497 = vmatmul.f32.gmra.mxu0 %v1413
        %v1498 = vpop.f32.mrf.mxu0
        %v1499 = vadd.f32 0.0, %v1498
        %1500 = vmatmul.f32.gmra.mxu0 %v1416
        %v1501 = vpop.f32.mrf.mxu0
        %v1502 = vadd.f32 0.0, %v1501
        %1503 = vmatmul.f32.gmra.mxu0 %v1419
        %v1504 = vpop.f32.mrf.mxu0
        %1505 = vmatmul.f32.gmra.mxu0 %v1422
        %v1506 = vpop.f32.mrf.mxu0
        %v1507 = vadd.f32 0.0, %v1506
        %1508 = vmatmul.f32.gmra.mxu0 %v1425
        %v1509 = vpop.f32.mrf.mxu0
        %v1510 = vadd.f32 0.0, %v1509
        %1511 = vmatmul.f32.gmra.mxu0 %v1428
        %v1512 = vpop.f32.mrf.mxu0
        %1513 = vmatmul.f32.gmra.mxu0 %v1431
        %v1514 = vpop.f32.mrf.mxu0
        %v1515 = vadd.f32 0.0, %v1514
        %1516 = vmatmul.f32.gmra.mxu0 %v1434
        %v1517 = vpop.f32.mrf.mxu0
        %v1518 = vadd.f32 0.0, %v1517
        %1519 = vmatmul.f32.gmra.mxu0 %v1437
        %v1520 = vpop.f32.mrf.mxu0
        %1521 = vmatmul.f32.gmra.mxu0 %v1440
        %v1522 = vpop.f32.mrf.mxu0
        %v1523 = vadd.f32 0.0, %v1522
        %1524 = vmatmul.f32.gmra.mxu0 %v1443
        %v1525 = vpop.f32.mrf.mxu0
        %v1526 = vadd.f32 0.0, %v1525
        %1527 = vmatmul.f32.gmra.mxu0 %v1446
        %v1528 = vpop.f32.mrf.mxu0
        %1529 = vmatmul.f32.gmra.mxu0 %v1449
        %v1530 = vpop.f32.mrf.mxu0
        %v1531 = vadd.f32 0.0, %v1530
        %1532 = vmatmul.f32.gmra.mxu0 %v1452
        %v1533 = vpop.f32.mrf.mxu0
        %v1534 = vadd.f32 0.0, %v1533
        %1535 = vmatmul.f32.gmra.mxu0 %v1455
        %v1536 = vpop.f32.mrf.mxu0
        %1537 = vdwg.mxu0
        %v1539 = vsel %vm544, %v1379, 0
        %v1542 = vsel %vm544, %v1378, 0
        %v1545 = vsel %vm544, %v1377, 0
        %1547 = vmatpush.msra.mxu0 0.0
        %1548 = vmatpush.msra.mxu0 0.0
        %1549 = vmatpush.msra.mxu0 0.0
        %1550 = vmatpush.msra.mxu0 0.0
        %1551 = vmatpush.msra.mxu0 0.0
        %1552 = vmatpush.msra.mxu0 0.0
        %1553 = vmatpush.msra.mxu0 0.0
        %1554 = vmatpush.msra.mxu0 0.0
        %1555 = vmatpush.msra.mxu0 0.0
        %1556 = vmatpush.msra.mxu0 0.0
        %1557 = vmatpush.msra.mxu0 0.0
        %1558 = vmatpush.msra.mxu0 0.0
        %1559 = vmatpush.msra.mxu0 0.0
        %1560 = vmatpush.msra.mxu0 0.0
        %1561 = vmatpush.msra.mxu0 0.0
        %1562 = vmatpush.msra.mxu0 %v1382
        %1563 = vmatmul.f32.gmra.mxu0 %v1539
        %v1564 = vpop.f32.mrf.mxu0
        %v1565 = vadd.f32 %v1475, %v1564
        %1566 = vmatmul.f32.gmra.mxu0 %v1542
        %v1567 = vpop.f32.mrf.mxu0
        %v1568 = vadd.f32 %v1478, %v1567
        %1569 = vmatmul.f32.gmra.mxu0 %v1545
        %v1570 = vpop.f32.mrf.mxu0
        %1571 = vmatmul.f32.gmra.mxu0 %v1386
        %v1572 = vpop.f32.mrf.mxu0
        %v1573 = vadd.f32 %v1483, %v1572
        %1574 = vmatmul.f32.gmra.mxu0 %v1389
        %v1575 = vpop.f32.mrf.mxu0
        %v1576 = vadd.f32 %v1486, %v1575
        %1577 = vmatmul.f32.gmra.mxu0 %v1392
        %v1578 = vpop.f32.mrf.mxu0
        %1579 = vmatmul.f32.gmra.mxu0 %v1395
        %v1580 = vpop.f32.mrf.mxu0
        %v1581 = vadd.f32 %v1491, %v1580
        %1582 = vmatmul.f32.gmra.mxu0 %v1398
        %v1583 = vpop.f32.mrf.mxu0
        %v1584 = vadd.f32 %v1494, %v1583
        %1585 = vmatmul.f32.gmra.mxu0 %v1401
        %v1586 = vpop.f32.mrf.mxu0
        %1587 = vmatmul.f32.gmra.mxu0 %v1404
        %v1588 = vpop.f32.mrf.mxu0
        %v1589 = vadd.f32 %v1499, %v1588
        %1590 = vmatmul.f32.gmra.mxu0 %v1407
        %v1591 = vpop.f32.mrf.mxu0
        %v1592 = vadd.f32 %v1502, %v1591
        %1593 = vmatmul.f32.gmra.mxu0 %v1410
        %v1594 = vpop.f32.mrf.mxu0
        %1595 = vmatmul.f32.gmra.mxu0 %v1413
        %v1596 = vpop.f32.mrf.mxu0
        %v1597 = vadd.f32 %v1507, %v1596
        %1598 = vmatmul.f32.gmra.mxu0 %v1416
        %v1599 = vpop.f32.mrf.mxu0
        %v1600 = vadd.f32 %v1510, %v1599
        %1601 = vmatmul.f32.gmra.mxu0 %v1419
        %v1602 = vpop.f32.mrf.mxu0
        %1603 = vmatmul.f32.gmra.mxu0 %v1422
        %v1604 = vpop.f32.mrf.mxu0
        %v1605 = vadd.f32 %v1515, %v1604
        %1606 = vmatmul.f32.gmra.mxu0 %v1425
        %v1607 = vpop.f32.mrf.mxu0
        %v1608 = vadd.f32 %v1518, %v1607
        %1609 = vmatmul.f32.gmra.mxu0 %v1428
        %v1610 = vpop.f32.mrf.mxu0
        %1611 = vmatmul.f32.gmra.mxu0 %v1431
        %v1612 = vpop.f32.mrf.mxu0
        %v1613 = vadd.f32 %v1523, %v1612
        %1614 = vmatmul.f32.gmra.mxu0 %v1434
        %v1615 = vpop.f32.mrf.mxu0
        %v1616 = vadd.f32 %v1526, %v1615
        %1617 = vmatmul.f32.gmra.mxu0 %v1437
        %v1618 = vpop.f32.mrf.mxu0
        %1619 = vmatmul.f32.gmra.mxu0 %v1440
        %v1620 = vpop.f32.mrf.mxu0
        %v1621 = vadd.f32 %v1531, %v1620
        %1622 = vmatmul.f32.gmra.mxu0 %v1443
        %v1623 = vpop.f32.mrf.mxu0
        %v1624 = vadd.f32 %v1534, %v1623
        %1625 = vmatmul.f32.gmra.mxu0 %v1446
        %v1626 = vpop.f32.mrf.mxu0
        %1627 = vdwg.mxu0
        %s1628 = scalar_lea.vmem %s3, 64
        %v1629 = vld [vmem:[%s1628] sm:$0xff]
        %v1631 = vsel %vm544, %v1352, 0
        %v1634 = vsel %vm544, %v1351, 0
        %v1637 = vsel %vm544, %v1380, 0
        %1639 = vmatpush.msra.mxu0 0.0
        %1640 = vmatpush.msra.mxu0 0.0
        %1641 = vmatpush.msra.mxu0 0.0
        %1642 = vmatpush.msra.mxu0 0.0
        %1643 = vmatpush.msra.mxu0 0.0
        %1644 = vmatpush.msra.mxu0 0.0
        %1645 = vmatpush.msra.mxu0 0.0
        %1646 = vmatpush.msra.mxu0 0.0
        %1647 = vmatpush.msra.mxu0 0.0
        %1648 = vmatpush.msra.mxu0 0.0
        %1649 = vmatpush.msra.mxu0 0.0
        %1650 = vmatpush.msra.mxu0 0.0
        %1651 = vmatpush.msra.mxu0 0.0
        %1652 = vmatpush.msra.mxu0 0.0
        %1653 = vmatpush.msra.mxu0 0.0
        %1654 = vmatpush.msra.mxu0 %v1629
        %1655 = vmatmul.f32.gmra.mxu0 %v1395
        %v1656 = vpop.f32.mrf.mxu0
        %v1657 = vadd.f32 0.0, %v1656
        %1658 = vmatmul.f32.gmra.mxu0 %v1398
        %v1659 = vpop.f32.mrf.mxu0
        %v1660 = vadd.f32 0.0, %v1659
        %1661 = vmatmul.f32.gmra.mxu0 %v1401
        %v1662 = vpop.f32.mrf.mxu0
        %1663 = vmatmul.f32.gmra.mxu0 %v1404
        %v1664 = vpop.f32.mrf.mxu0
        %v1665 = vadd.f32 0.0, %v1664
        %1666 = vmatmul.f32.gmra.mxu0 %v1407
        %v1667 = vpop.f32.mrf.mxu0
        %v1668 = vadd.f32 0.0, %v1667
        %1669 = vmatmul.f32.gmra.mxu0 %v1410
        %v1670 = vpop.f32.mrf.mxu0
        %1671 = vmatmul.f32.gmra.mxu0 %v1413
        %v1672 = vpop.f32.mrf.mxu0
        %v1673 = vadd.f32 0.0, %v1672
        %1674 = vmatmul.f32.gmra.mxu0 %v1416
        %v1675 = vpop.f32.mrf.mxu0
        %v1676 = vadd.f32 0.0, %v1675
        %1677 = vmatmul.f32.gmra.mxu0 %v1419
        %v1678 = vpop.f32.mrf.mxu0
        %1679 = vmatmul.f32.gmra.mxu0 %v1422
        %v1680 = vpop.f32.mrf.mxu0
        %v1681 = vadd.f32 0.0, %v1680
        %1682 = vmatmul.f32.gmra.mxu0 %v1425
        %v1683 = vpop.f32.mrf.mxu0
        %v1684 = vadd.f32 0.0, %v1683
        %1685 = vmatmul.f32.gmra.mxu0 %v1428
        %v1686 = vpop.f32.mrf.mxu0
        %1687 = vmatmul.f32.gmra.mxu0 %v1431
        %v1688 = vpop.f32.mrf.mxu0
        %v1689 = vadd.f32 0.0, %v1688
        %1690 = vmatmul.f32.gmra.mxu0 %v1434
        %v1691 = vpop.f32.mrf.mxu0
        %v1692 = vadd.f32 0.0, %v1691
        %1693 = vmatmul.f32.gmra.mxu0 %v1437
        %v1694 = vpop.f32.mrf.mxu0
        %1695 = vmatmul.f32.gmra.mxu0 %v1440
        %v1696 = vpop.f32.mrf.mxu0
        %v1697 = vadd.f32 0.0, %v1696
        %1698 = vmatmul.f32.gmra.mxu0 %v1443
        %v1699 = vpop.f32.mrf.mxu0
        %v1700 = vadd.f32 0.0, %v1699
        %1701 = vmatmul.f32.gmra.mxu0 %v1446
        %v1702 = vpop.f32.mrf.mxu0
        %1703 = vmatmul.f32.gmra.mxu0 %v1449
        %v1704 = vpop.f32.mrf.mxu0
        %v1705 = vadd.f32 0.0, %v1704
        %1706 = vmatmul.f32.gmra.mxu0 %v1452
        %v1707 = vpop.f32.mrf.mxu0
        %v1708 = vadd.f32 0.0, %v1707
        %1709 = vmatmul.f32.gmra.mxu0 %v1455
        %v1710 = vpop.f32.mrf.mxu0
        %1711 = vmatmul.f32.gmra.mxu0 %v1631
        %v1712 = vpop.f32.mrf.mxu0
        %v1713 = vadd.f32 0.0, %v1712
        %1714 = vmatmul.f32.gmra.mxu0 %v1634
        %v1715 = vpop.f32.mrf.mxu0
        %v1716 = vadd.f32 0.0, %v1715
        %1717 = vmatmul.f32.gmra.mxu0 %v1637
        %v1718 = vpop.f32.mrf.mxu0
        %1719 = vdwg.mxu0
        %v1720 = vadd.f32 %v1565, %v1657
        %v1721 = vadd.f32 %v1568, %v1660
        %v1722 = vadd.f32 %v1573, %v1665
        %v1723 = vadd.f32 %v1576, %v1668
        %v1724 = vadd.f32 %v1581, %v1673
        %v1725 = vadd.f32 %v1584, %v1676
        %v1726 = vadd.f32 %v1589, %v1681
        %v1727 = vadd.f32 %v1592, %v1684
        %v1728 = vadd.f32 %v1597, %v1689
        %v1729 = vadd.f32 %v1600, %v1692
        %v1730 = vadd.f32 %v1605, %v1697
        %v1731 = vadd.f32 %v1608, %v1700
        %v1732 = vadd.f32 %v1613, %v1705
        %v1733 = vadd.f32 %v1616, %v1708
        %v1734 = vadd.f32 %v1621, %v1713
        %v1735 = vadd.f32 %v1624, %v1716
        %v1736 = vadd.f32 %v1304, %v1720
        %v1737 = vadd.f32 %v1305, %v1721
        %v1738 = vadd.f32 %v1306, %v1722
        %v1739 = vadd.f32 %v1307, %v1723
        %v1740 = vadd.f32 %v1308, %v1724
        %v1741 = vadd.f32 %v1309, %v1725
        %v1742 = vadd.f32 %v1310, %v1726
        %v1743 = vadd.f32 %v1311, %v1727
        %v1744 = vadd.f32 %v1312, %v1728
        %v1745 = vadd.f32 %v1313, %v1729
        %v1746 = vadd.f32 %v1314, %v1730
        %v1747 = vadd.f32 %v1315, %v1731
        %v1748 = vadd.f32 %v1316, %v1732
        %v1749 = vadd.f32 %v1317, %v1733
        %v1750 = vadd.f32 %v1318, %v1734
        %v1751 = vadd.f32 %v1319, %v1735
        %v1752 = vld [vmem:[%s4] sm:$0x1]
        %v1754 = vperm.slane %v1752, 0
        %v1756 = vmul.f32 %v1736, %v1754
        %v1757 = vmul.f32 %v1737, %v1754
        %v1758 = vmul.f32 %v1738, %v1754
        %v1759 = vmul.f32 %v1739, %v1754
        %v1760 = vmul.f32 %v1740, %v1754
        %v1761 = vmul.f32 %v1741, %v1754
        %v1762 = vmul.f32 %v1742, %v1754
        %v1763 = vmul.f32 %v1743, %v1754
        %v1764 = vmul.f32 %v1744, %v1754
        %v1765 = vmul.f32 %v1745, %v1754
        %v1766 = vmul.f32 %v1746, %v1754
        %v1767 = vmul.f32 %v1747, %v1754
        %v1768 = vmul.f32 %v1748, %v1754
        %v1769 = vmul.f32 %v1749, %v1754
        %v1770 = vmul.f32 %v1750, %v1754
        %v1771 = vmul.f32 %v1751, %v1754
        %v1772 = vld [vmem:[%s5] sm:$0x1]
        %v1774 = vperm.slane %v1772, 0
        %v1776 = vadd.f32 %v1756, %v1774
        %v1777 = vadd.f32 %v1757, %v1774
        %v1778 = vadd.f32 %v1758, %v1774
        %v1779 = vadd.f32 %v1759, %v1774
        %v1780 = vadd.f32 %v1760, %v1774
        %v1781 = vadd.f32 %v1761, %v1774
        %v1782 = vadd.f32 %v1762, %v1774
        %v1783 = vadd.f32 %v1763, %v1774
        %v1784 = vadd.f32 %v1764, %v1774
        %v1785 = vadd.f32 %v1765, %v1774
        %v1786 = vadd.f32 %v1766, %v1774
        %v1787 = vadd.f32 %v1767, %v1774
        %v1788 = vadd.f32 %v1768, %v1774
        %v1789 = vadd.f32 %v1769, %v1774
        %v1790 = vadd.f32 %v1770, %v1774
        %v1791 = vadd.f32 %v1771, %v1774
        %v1792 = vxor.u32 %v1776, 2147483648
        %v1793 = vxor.u32 %v1777, 2147483648
        %v1794 = vxor.u32 %v1778, 2147483648
        %v1795 = vxor.u32 %v1779, 2147483648
        %v1796 = vxor.u32 %v1780, 2147483648
        %v1797 = vxor.u32 %v1781, 2147483648
        %v1798 = vxor.u32 %v1782, 2147483648
        %v1799 = vxor.u32 %v1783, 2147483648
        %v1800 = vxor.u32 %v1784, 2147483648
        %v1801 = vxor.u32 %v1785, 2147483648
        %v1802 = vxor.u32 %v1786, 2147483648
        %v1803 = vxor.u32 %v1787, 2147483648
        %v1804 = vxor.u32 %v1788, 2147483648
        %v1805 = vxor.u32 %v1789, 2147483648
        %v1806 = vxor.u32 %v1790, 2147483648
        %v1807 = vxor.u32 %v1791, 2147483648
        %v1808 = vmul.f32 %v1792, 1.442695
        %v1809 = vpow.pop %v1808
        %v1810 = vmul.f32 %v1793, 1.442695
        %v1811 = vpow.pop %v1810
        %v1812 = vmul.f32 %v1794, 1.442695
        %v1813 = vpow.pop %v1812
        %v1814 = vmul.f32 %v1795, 1.442695
        %v1815 = vpow.pop %v1814
        %v1816 = vmul.f32 %v1796, 1.442695
        %v1817 = vpow.pop %v1816
        %v1818 = vmul.f32 %v1797, 1.442695
        %v1819 = vpow.pop %v1818
        %v1820 = vmul.f32 %v1798, 1.442695
        %v1821 = vpow.pop %v1820
        %v1822 = vmul.f32 %v1799, 1.442695
        %v1823 = vpow.pop %v1822
        %v1824 = vmul.f32 %v1800, 1.442695
        %v1825 = vpow.pop %v1824
        %v1826 = vmul.f32 %v1801, 1.442695
        %v1827 = vpow.pop %v1826
        %v1828 = vmul.f32 %v1802, 1.442695
        %v1829 = vpow.pop %v1828
        %v1830 = vmul.f32 %v1803, 1.442695
        %v1831 = vpow.pop %v1830
        %v1832 = vmul.f32 %v1804, 1.442695
        %v1833 = vpow.pop %v1832
        %v1834 = vmul.f32 %v1805, 1.442695
        %v1835 = vpow.pop %v1834
        %v1836 = vmul.f32 %v1806, 1.442695
        %v1837 = vpow.pop %v1836
        %v1838 = vmul.f32 %v1807, 1.442695
        %v1839 = vpow.pop %v1838
        %v1840 = vadd.f32 %v1809, 1.0
        %v1841 = vadd.f32 %v1811, 1.0
        %v1842 = vadd.f32 %v1813, 1.0
        %v1843 = vadd.f32 %v1815, 1.0
        %v1844 = vadd.f32 %v1817, 1.0
        %v1845 = vadd.f32 %v1819, 1.0
        %v1846 = vadd.f32 %v1821, 1.0
        %v1847 = vadd.f32 %v1823, 1.0
        %v1848 = vadd.f32 %v1825, 1.0
        %v1849 = vadd.f32 %v1827, 1.0
        %v1850 = vadd.f32 %v1829, 1.0
        %v1851 = vadd.f32 %v1831, 1.0
        %v1852 = vadd.f32 %v1833, 1.0
        %v1853 = vadd.f32 %v1835, 1.0
        %v1854 = vadd.f32 %v1837, 1.0
        %v1855 = vadd.f32 %v1839, 1.0
        %v1856 = vrcp.pop %v1840
        %v1857 = vmul.f32 %v1840, %v1856
        %v1858 = vsub.f32 1.0, %v1857
        %v1859 = vmul.f32 %v1856, %v1858
        %v1860 = vadd.f32 %v1856, %v1859
        %vm1861 = vweird.f32 %v1840
        %vm1862 = vweird.f32 %v1856
        %vm1863 = vmor %vm1861, %vm1862
        %v1864 = vsel %vm1863, %v1856, %v1860
        %v1865 = vand.u32 2147483647, %v1840
        %vm1866 = vcmp.eq.f32.partialorder %v1865, 8.507059e+37
        %v1867 = vand.u32 %v1840, 2147483648
        %v1868 = vor.u32 1.1754944e-38, %v1867
        %v1869 = vsel %vm1866, %v1868, %v1864
        %v1870 = vmul.f32 1.0, %v1869
        %v1871 = vrcp.pop %v1841
        %v1872 = vmul.f32 %v1841, %v1871
        %v1873 = vsub.f32 1.0, %v1872
        %v1874 = vmul.f32 %v1871, %v1873
        %v1875 = vadd.f32 %v1871, %v1874
        %vm1876 = vweird.f32 %v1841
        %vm1877 = vweird.f32 %v1871
        %vm1878 = vmor %vm1876, %vm1877
        %v1879 = vsel %vm1878, %v1871, %v1875
        %v1880 = vand.u32 2147483647, %v1841
        %vm1881 = vcmp.eq.f32.partialorder %v1880, 8.507059e+37
        %v1882 = vand.u32 %v1841, 2147483648
        %v1883 = vor.u32 1.1754944e-38, %v1882
        %v1884 = vsel %vm1881, %v1883, %v1879
        %v1885 = vmul.f32 1.0, %v1884
        %v1886 = vrcp.pop %v1842
        %v1887 = vmul.f32 %v1842, %v1886
        %v1888 = vsub.f32 1.0, %v1887
        %v1889 = vmul.f32 %v1886, %v1888
        %v1890 = vadd.f32 %v1886, %v1889
        %vm1891 = vweird.f32 %v1842
        %vm1892 = vweird.f32 %v1886
        %vm1893 = vmor %vm1891, %vm1892
        %v1894 = vsel %vm1893, %v1886, %v1890
        %v1895 = vand.u32 2147483647, %v1842
        %vm1896 = vcmp.eq.f32.partialorder %v1895, 8.507059e+37
        %v1897 = vand.u32 %v1842, 2147483648
        %v1898 = vor.u32 1.1754944e-38, %v1897
        %v1899 = vsel %vm1896, %v1898, %v1894
        %v1900 = vmul.f32 1.0, %v1899
        %v1901 = vrcp.pop %v1843
        %v1902 = vmul.f32 %v1843, %v1901
        %v1903 = vsub.f32 1.0, %v1902
        %v1904 = vmul.f32 %v1901, %v1903
        %v1905 = vadd.f32 %v1901, %v1904
        %vm1906 = vweird.f32 %v1843
        %vm1907 = vweird.f32 %v1901
        %vm1908 = vmor %vm1906, %vm1907
        %v1909 = vsel %vm1908, %v1901, %v1905
        %v1910 = vand.u32 2147483647, %v1843
        %vm1911 = vcmp.eq.f32.partialorder %v1910, 8.507059e+37
        %v1912 = vand.u32 %v1843, 2147483648
        %v1913 = vor.u32 1.1754944e-38, %v1912
        %v1914 = vsel %vm1911, %v1913, %v1909
        %v1915 = vmul.f32 1.0, %v1914
        %v1916 = vrcp.pop %v1844
        %v1917 = vmul.f32 %v1844, %v1916
        %v1918 = vsub.f32 1.0, %v1917
        %v1919 = vmul.f32 %v1916, %v1918
        %v1920 = vadd.f32 %v1916, %v1919
        %vm1921 = vweird.f32 %v1844
        %vm1922 = vweird.f32 %v1916
        %vm1923 = vmor %vm1921, %vm1922
        %v1924 = vsel %vm1923, %v1916, %v1920
        %v1925 = vand.u32 2147483647, %v1844
        %vm1926 = vcmp.eq.f32.partialorder %v1925, 8.507059e+37
        %v1927 = vand.u32 %v1844, 2147483648
        %v1928 = vor.u32 1.1754944e-38, %v1927
        %v1929 = vsel %vm1926, %v1928, %v1924
        %v1930 = vmul.f32 1.0, %v1929
        %v1931 = vrcp.pop %v1845
        %v1932 = vmul.f32 %v1845, %v1931
        %v1933 = vsub.f32 1.0, %v1932
        %v1934 = vmul.f32 %v1931, %v1933
        %v1935 = vadd.f32 %v1931, %v1934
        %vm1936 = vweird.f32 %v1845
        %vm1937 = vweird.f32 %v1931
        %vm1938 = vmor %vm1936, %vm1937
        %v1939 = vsel %vm1938, %v1931, %v1935
        %v1940 = vand.u32 2147483647, %v1845
        %vm1941 = vcmp.eq.f32.partialorder %v1940, 8.507059e+37
        %v1942 = vand.u32 %v1845, 2147483648
        %v1943 = vor.u32 1.1754944e-38, %v1942
        %v1944 = vsel %vm1941, %v1943, %v1939
        %v1945 = vmul.f32 1.0, %v1944
        %v1946 = vrcp.pop %v1846
        %v1947 = vmul.f32 %v1846, %v1946
        %v1948 = vsub.f32 1.0, %v1947
        %v1949 = vmul.f32 %v1946, %v1948
        %v1950 = vadd.f32 %v1946, %v1949
        %vm1951 = vweird.f32 %v1846
        %vm1952 = vweird.f32 %v1946
        %vm1953 = vmor %vm1951, %vm1952
        %v1954 = vsel %vm1953, %v1946, %v1950
        %v1955 = vand.u32 2147483647, %v1846
        %vm1956 = vcmp.eq.f32.partialorder %v1955, 8.507059e+37
        %v1957 = vand.u32 %v1846, 2147483648
        %v1958 = vor.u32 1.1754944e-38, %v1957
        %v1959 = vsel %vm1956, %v1958, %v1954
        %v1960 = vmul.f32 1.0, %v1959
        %v1961 = vrcp.pop %v1847
        %v1962 = vmul.f32 %v1847, %v1961
        %v1963 = vsub.f32 1.0, %v1962
        %v1964 = vmul.f32 %v1961, %v1963
        %v1965 = vadd.f32 %v1961, %v1964
        %vm1966 = vweird.f32 %v1847
        %vm1967 = vweird.f32 %v1961
        %vm1968 = vmor %vm1966, %vm1967
        %v1969 = vsel %vm1968, %v1961, %v1965
        %v1970 = vand.u32 2147483647, %v1847
        %vm1971 = vcmp.eq.f32.partialorder %v1970, 8.507059e+37
        %v1972 = vand.u32 %v1847, 2147483648
        %v1973 = vor.u32 1.1754944e-38, %v1972
        %v1974 = vsel %vm1971, %v1973, %v1969
        %v1975 = vmul.f32 1.0, %v1974
        %v1976 = vrcp.pop %v1848
        %v1977 = vmul.f32 %v1848, %v1976
        %v1978 = vsub.f32 1.0, %v1977
        %v1979 = vmul.f32 %v1976, %v1978
        %v1980 = vadd.f32 %v1976, %v1979
        %vm1981 = vweird.f32 %v1848
        %vm1982 = vweird.f32 %v1976
        %vm1983 = vmor %vm1981, %vm1982
        %v1984 = vsel %vm1983, %v1976, %v1980
        %v1985 = vand.u32 2147483647, %v1848
        %vm1986 = vcmp.eq.f32.partialorder %v1985, 8.507059e+37
        %v1987 = vand.u32 %v1848, 2147483648
        %v1988 = vor.u32 1.1754944e-38, %v1987
        %v1989 = vsel %vm1986, %v1988, %v1984
        %v1990 = vmul.f32 1.0, %v1989
        %v1991 = vrcp.pop %v1849
        %v1992 = vmul.f32 %v1849, %v1991
        %v1993 = vsub.f32 1.0, %v1992
        %v1994 = vmul.f32 %v1991, %v1993
        %v1995 = vadd.f32 %v1991, %v1994
        %vm1996 = vweird.f32 %v1849
        %vm1997 = vweird.f32 %v1991
        %vm1998 = vmor %vm1996, %vm1997
        %v1999 = vsel %vm1998, %v1991, %v1995
        %v2000 = vand.u32 2147483647, %v1849
        %vm2001 = vcmp.eq.f32.partialorder %v2000, 8.507059e+37
        %v2002 = vand.u32 %v1849, 2147483648
        %v2003 = vor.u32 1.1754944e-38, %v2002
        %v2004 = vsel %vm2001, %v2003, %v1999
        %v2005 = vmul.f32 1.0, %v2004
        %v2006 = vrcp.pop %v1850
        %v2007 = vmul.f32 %v1850, %v2006
        %v2008 = vsub.f32 1.0, %v2007
        %v2009 = vmul.f32 %v2006, %v2008
        %v2010 = vadd.f32 %v2006, %v2009
        %vm2011 = vweird.f32 %v1850
        %vm2012 = vweird.f32 %v2006
        %vm2013 = vmor %vm2011, %vm2012
        %v2014 = vsel %vm2013, %v2006, %v2010
        %v2015 = vand.u32 2147483647, %v1850
        %vm2016 = vcmp.eq.f32.partialorder %v2015, 8.507059e+37
        %v2017 = vand.u32 %v1850, 2147483648
        %v2018 = vor.u32 1.1754944e-38, %v2017
        %v2019 = vsel %vm2016, %v2018, %v2014
        %v2020 = vmul.f32 1.0, %v2019
        %v2021 = vrcp.pop %v1851
        %v2022 = vmul.f32 %v1851, %v2021
        %v2023 = vsub.f32 1.0, %v2022
        %v2024 = vmul.f32 %v2021, %v2023
        %v2025 = vadd.f32 %v2021, %v2024
        %vm2026 = vweird.f32 %v1851
        %vm2027 = vweird.f32 %v2021
        %vm2028 = vmor %vm2026, %vm2027
        %v2029 = vsel %vm2028, %v2021, %v2025
        %v2030 = vand.u32 2147483647, %v1851
        %vm2031 = vcmp.eq.f32.partialorder %v2030, 8.507059e+37
        %v2032 = vand.u32 %v1851, 2147483648
        %v2033 = vor.u32 1.1754944e-38, %v2032
        %v2034 = vsel %vm2031, %v2033, %v2029
        %v2035 = vmul.f32 1.0, %v2034
        %v2036 = vrcp.pop %v1852
        %v2037 = vmul.f32 %v1852, %v2036
        %v2038 = vsub.f32 1.0, %v2037
        %v2039 = vmul.f32 %v2036, %v2038
        %v2040 = vadd.f32 %v2036, %v2039
        %vm2041 = vweird.f32 %v1852
        %vm2042 = vweird.f32 %v2036
        %vm2043 = vmor %vm2041, %vm2042
        %v2044 = vsel %vm2043, %v2036, %v2040
        %v2045 = vand.u32 2147483647, %v1852
        %vm2046 = vcmp.eq.f32.partialorder %v2045, 8.507059e+37
        %v2047 = vand.u32 %v1852, 2147483648
        %v2048 = vor.u32 1.1754944e-38, %v2047
        %v2049 = vsel %vm2046, %v2048, %v2044
        %v2050 = vmul.f32 1.0, %v2049
        %v2051 = vrcp.pop %v1853
        %v2052 = vmul.f32 %v1853, %v2051
        %v2053 = vsub.f32 1.0, %v2052
        %v2054 = vmul.f32 %v2051, %v2053
        %v2055 = vadd.f32 %v2051, %v2054
        %vm2056 = vweird.f32 %v1853
        %vm2057 = vweird.f32 %v2051
        %vm2058 = vmor %vm2056, %vm2057
        %v2059 = vsel %vm2058, %v2051, %v2055
        %v2060 = vand.u32 2147483647, %v1853
        %vm2061 = vcmp.eq.f32.partialorder %v2060, 8.507059e+37
        %v2062 = vand.u32 %v1853, 2147483648
        %v2063 = vor.u32 1.1754944e-38, %v2062
        %v2064 = vsel %vm2061, %v2063, %v2059
        %v2065 = vmul.f32 1.0, %v2064
        %v2066 = vrcp.pop %v1854
        %v2067 = vmul.f32 %v1854, %v2066
        %v2068 = vsub.f32 1.0, %v2067
        %v2069 = vmul.f32 %v2066, %v2068
        %v2070 = vadd.f32 %v2066, %v2069
        %vm2071 = vweird.f32 %v1854
        %vm2072 = vweird.f32 %v2066
        %vm2073 = vmor %vm2071, %vm2072
        %v2074 = vsel %vm2073, %v2066, %v2070
        %v2075 = vand.u32 2147483647, %v1854
        %vm2076 = vcmp.eq.f32.partialorder %v2075, 8.507059e+37
        %v2077 = vand.u32 %v1854, 2147483648
        %v2078 = vor.u32 1.1754944e-38, %v2077
        %v2079 = vsel %vm2076, %v2078, %v2074
        %v2080 = vmul.f32 1.0, %v2079
        %v2081 = vrcp.pop %v1855
        %v2082 = vmul.f32 %v1855, %v2081
        %v2083 = vsub.f32 1.0, %v2082
        %v2084 = vmul.f32 %v2081, %v2083
        %v2085 = vadd.f32 %v2081, %v2084
        %vm2086 = vweird.f32 %v1855
        %vm2087 = vweird.f32 %v2081
        %vm2088 = vmor %vm2086, %vm2087
        %v2089 = vsel %vm2088, %v2081, %v2085
        %v2090 = vand.u32 2147483647, %v1855
        %vm2091 = vcmp.eq.f32.partialorder %v2090, 8.507059e+37
        %v2092 = vand.u32 %v1855, 2147483648
        %v2093 = vor.u32 1.1754944e-38, %v2092
        %v2094 = vsel %vm2091, %v2093, %v2089
        %v2095 = vmul.f32 1.0, %v2094
        %v2096 = vmul.f32 %v1776, %v1870
        %v2097 = vmul.f32 %v1777, %v1885
        %v2098 = vmul.f32 %v1778, %v1900
        %v2099 = vmul.f32 %v1779, %v1915
        %v2100 = vmul.f32 %v1780, %v1930
        %v2101 = vmul.f32 %v1781, %v1945
        %v2102 = vmul.f32 %v1782, %v1960
        %v2103 = vmul.f32 %v1783, %v1975
        %v2104 = vmul.f32 %v1784, %v1990
        %v2105 = vmul.f32 %v1785, %v2005
        %v2106 = vmul.f32 %v1786, %v2020
        %v2107 = vmul.f32 %v1787, %v2035
        %v2108 = vmul.f32 %v1788, %v2050
        %v2109 = vmul.f32 %v1789, %v2065
        %v2110 = vmul.f32 %v1790, %v2080
        %v2111 = vmul.f32 %v1791, %v2095
        %vm2112 = vcmask 261120
        %2113 = vst.msk [vmem:[%s361] sm:$0xff] %vm2112, %v2096
        %2114 = vst.msk [vmem:[%s361 + $0x8] sm:$0xff] %vm2112, %v2097
        %2115 = vst.msk [vmem:[%s361 + $0x10] sm:$0xff] %vm2112, %v2098
        %2116 = vst.msk [vmem:[%s361 + $0x18] sm:$0xff] %vm2112, %v2099
        %2117 = vst.msk [vmem:[%s361 + $0x20] sm:$0xff] %vm2112, %v2100
        %2118 = vst.msk [vmem:[%s361 + $0x28] sm:$0xff] %vm2112, %v2101
        %2119 = vst.msk [vmem:[%s361 + $0x30] sm:$0xff] %vm2112, %v2102
        %2120 = vst.msk [vmem:[%s361 + $0x38] sm:$0xff] %vm2112, %v2103
        %2121 = vst.msk [vmem:[%s361 + $0x40] sm:$0xff] %vm2112, %v2104
        %2122 = vst.msk [vmem:[%s361 + $0x48] sm:$0xff] %vm2112, %v2105
        %2123 = vst.msk [vmem:[%s361 + $0x50] sm:$0xff] %vm2112, %v2106
        %2124 = vst.msk [vmem:[%s361 + $0x58] sm:$0xff] %vm2112, %v2107
        %2125 = vst.msk [vmem:[%s361 + $0x60] sm:$0xff] %vm2112, %v2108
        %2126 = vst.msk [vmem:[%s361 + $0x68] sm:$0xff] %vm2112, %v2109
        %2127 = vst.msk [vmem:[%s361 + $0x70] sm:$0xff] %vm2112, %v2110
        %2128 = vst.msk [vmem:[%s361 + $0x78] sm:$0xff] %vm2112, %v2111
        %s2129 = sand.u32 %s205, 1
        %s2130 = scalar_lea.sflag [#allocation3], %s2129
        %s2131 = sand.u32 %s205, 1
        %s2132 = smul.addr %s2131, 128
        %s2133 = scalar_lea.vmem [#allocation2], %s2132
        // Predicated region
        $region45: #{tpu_custom_call.1} parent=43 // pred_check
          %p2134 = pneg %p215
        $region46: #{tpu_custom_call.1} parent=43 // pred_check_branch
          %2136 = sbr.rel (%p2134) target = $region48
        $region47: #{tpu_custom_call.1} parent=43 // pred_region
          %s2137 = smul.u32 8, %s25
          %2139 = vsyncadd %s2130, 0
          %s2140 = smul.addr %s2137, 2
          %s2141 = smul.addr %s24, 32
          %s2142 = sadd.s32 %s2140, %s2141
          %s2143 = smul.addr %s2142, 8
          %s2144 = scalar_lea.hbm %s6, %s2143
          %s2145 = sshll.u32 %s2133, 4
          %s2146 = int_to_ptr.vmem [resolvable:$true] %s2145
          %s2147 = sshll.u32 %s2144, 4
          %s2148 = int_to_ptr.hbm [resolvable:$true] %s2147
          %2153 = dma.vmem_to_hbm [thread:$0]  %s2146, 2048, %s2148, %s2130, 128, 128, 8
        $region48: #{tpu_custom_call.1} parent=43 // pred_fallthru
          _
      $region44: #{tpu_custom_call.1} parent=5 // pred_fallthru
        _
      %p2154 = scmp.le.s32.totalorder 2, %s15
      // Predicated region
      $region49: #{tpu_custom_call.1} parent=5 // pred_check
        %p2155 = pneg %p2154
      $region50: #{tpu_custom_call.1} parent=5 // pred_check_branch
        %2157 = sbr.rel (%p2155) target = $region52
      $region51: #{tpu_custom_call.1} parent=5 // pred_region
        %s2158 = ssub.s32 %s15, 2
        // Predicated region
        $region53: #{tpu_custom_call.1} parent=51 // pred_check
          %p2159 = pneg %p221
        $region54: #{tpu_custom_call.1} parent=51 // pred_check_branch
          %2161 = sbr.rel (%p2159) target = $region56
        $region55: #{tpu_custom_call.1} parent=51 // pred_region
          %s2162 = sand.u32 %s206, 1
          %s2163 = scalar_lea.sflag [#allocation3], %s2162
          %s2164 = sand.u32 %s206, 1
          %s2165 = smul.addr %s2164, 128
          %s2166 = scalar_lea.vmem [#allocation2], %s2165
          %2168 = dma.done %s2163, 2048
        $region56: #{tpu_custom_call.1} parent=51 // pred_fallthru
          _
      $region52: #{tpu_custom_call.1} parent=5 // pred_fallthru
        _
    $region6: #{tpu_custom_call.1} parent=1 // loop_footer
      %s19 = sadd.s32 1, %s15
    $region7: #{tpu_custom_call.1} parent=1 // loop_footer_branch
      %14 = sbr.rel target = $region3
    $region8: #{tpu_custom_call.1} parent=1 // loop_exit
      _
    %2169 = vsyncpa [#allocation3], 1
    %s2170 = scalar_lea.sflag [#allocation3], 1
    %2171 = vsyncpa %s2170, 1

</llo_original>
